<compile_context>
chip_gen: v7x
topology: tpu7x:2x2x1
jax: 0.10.0
libtpu: 0.0.40
codegen_flags: <defaults>
</compile_context>

<pallas_src>
import functools
import math

import jax
import jax.numpy as jnp
from jax.experimental import pallas as pl
from jax.experimental.pallas import tpu as pltpu


# ----------------------------- math helpers --------------------------------

def _gelu(x):
    # exact (erf-based) GELU, matching torch.nn.functional.gelu default
    return 0.5 * x * (1.0 + jax.lax.erf(x * (1.0 / math.sqrt(2.0))))


def _layernorm(x, g, b, eps=1e-5):
    mu = jnp.mean(x, axis=-1, keepdims=True)
    var = jnp.mean((x - mu) ** 2, axis=-1, keepdims=True)
    return (x - mu) * jax.lax.rsqrt(var + eps) * g + b


# --------------------------------- kernel ----------------------------------

def _self_attention_block_kernel(x_ref, wqkv_ref, bqkv_ref, wo_ref, bo_ref,
                                 w1_ref, b1_ref, w2_ref, b2_ref, ln_ref,
                                 out_ref, attw_ref, *, nhead):
    f32 = jnp.float32
    x = x_ref[0]                       # [S, D]
    S, D = x.shape
    dh = D // nhead
    scale = 1.0 / math.sqrt(dh)

    # ---- fused QKV projection: single [S, 3D] MXU pass -----------------------
    qkv = jnp.dot(x, wqkv_ref[...], preferred_element_type=f32) + bqkv_ref[...]
    q = qkv[:, 0:D] * scale
    k = qkv[:, D:2 * D]
    v = qkv[:, 2 * D:3 * D]

    # ---- per-head scaled dot-product attention (static unrolled loop) --------
    head_outs = []
    attw_sum = jnp.zeros((S, S), f32)
    for h in range(nhead):
        lo, hi = h * dh, (h + 1) * dh
        qh = q[:, lo:hi]
        kh = k[:, lo:hi]
        vh = v[:, lo:hi]
        # qh @ kh^T via dot_general (contract last dims; no explicit transpose)
        s = jax.lax.dot_general(qh, kh, (((1,), (1,)), ((), ())),
                                preferred_element_type=f32)       # [S, S]
        s = s - jnp.max(s, axis=-1, keepdims=True)
        p = jnp.exp(s)
        p = p / jnp.sum(p, axis=-1, keepdims=True)
        attw_sum = attw_sum + p
        head_outs.append(jnp.dot(p, vh, preferred_element_type=f32))
    attn_out = jnp.concatenate(head_outs, axis=-1)                # [S, D]
    attw_ref[0] = attw_sum * (1.0 / nhead)

    # ---- output projection + residual + LayerNorm1 ----------------------------
    proj = jnp.dot(attn_out, wo_ref[...], preferred_element_type=f32) + bo_ref[...]
    ln = ln_ref[...]                                              # [4, D]
    x1 = _layernorm(x + proj, ln[0:1, :], ln[1:2, :])

    # ---- feed-forward (Linear -> GELU -> Linear) + residual + LayerNorm2 ------
    h1 = _gelu(jnp.dot(x1, w1_ref[...], preferred_element_type=f32) + b1_ref[...])
    ff = jnp.dot(h1, w2_ref[...], preferred_element_type=f32) + b2_ref[...]
    out_ref[0] = _layernorm(x1 + ff, ln[2:3, :], ln[3:4, :])


# -------------------------------- wrapper -----------------------------------

def self_attention_block(src, params, *, nhead):
    B, S, D = src.shape
    wqkv, bqkv, wo, bo, w1, b1, w2, b2, ln = params

    kernel = functools.partial(_self_attention_block_kernel, nhead=nhead)

    def full_spec(p):
        nd = p.ndim
        return pl.BlockSpec(p.shape, lambda b: (0,) * nd)

    in_specs = ([pl.BlockSpec((1, S, D), lambda b: (b, 0, 0))]
                + [full_spec(p) for p in (wqkv, bqkv, wo, bo, w1, b1, w2, b2, ln)])
    out_specs = (pl.BlockSpec((1, S, D), lambda b: (b, 0, 0)),
                 pl.BlockSpec((1, S, S), lambda b: (b, 0, 0)))
    out_shape = (jax.ShapeDtypeStruct((B, S, D), jnp.float32),
                 jax.ShapeDtypeStruct((B, S, S), jnp.float32))

    out, attw = pl.pallas_call(
        kernel,
        grid=(B,),
        in_specs=in_specs,
        out_specs=out_specs,
        out_shape=out_shape,
        compiler_params=pltpu.CompilerParams(dimension_semantics=("parallel",)),
    )(src.astype(jnp.float32), wqkv, bqkv, wo, bo, w1, b1, w2, b2, ln)
    return out, attw


# ------------------------- deterministic parameters --------------------------

def init_params(key, d_model, dim_feedforward):
    keys = jax.random.split(key, 4)

    def lin(k, din, dout):
        kw, kb = jax.random.split(k)
        w = jax.random.normal(kw, (din, dout), jnp.float32) * 0.05
        b = jax.random.normal(kb, (1, dout), jnp.float32) * 0.05
        return w, b

    wqkv, bqkv = lin(keys[0], d_model, 3 * d_model)   # fused in_proj (pre-transposed)
    wo, bo = lin(keys[1], d_model, d_model)           # out_proj
    w1, b1 = lin(keys[2], d_model, dim_feedforward)   # linear1
    w2, b2 = lin(keys[3], dim_feedforward, d_model)   # linear2
    # packed LayerNorm slab: rows = [norm1.weight, norm1.bias, norm2.weight, norm2.bias]
    ln = jnp.concatenate([jnp.ones((1, d_model), jnp.float32),
                          jnp.zeros((1, d_model), jnp.float32),
                          jnp.ones((1, d_model), jnp.float32),
                          jnp.zeros((1, d_model), jnp.float32)], axis=0)
    return (wqkv, bqkv, wo, bo, w1, b1, w2, b2, ln)


# ------------------------------ pure-JAX reference ---------------------------

def reference_forward(src, params, *, nhead):
    wqkv, bqkv, wo, bo, w1, b1, w2, b2, ln = params
    B, S, D = src.shape
    dh = D // nhead

    qkv = src @ wqkv + bqkv
    q, k, v = jnp.split(qkv, 3, axis=-1)
    q = q * (1.0 / math.sqrt(dh))

    def split_heads(t):
        return t.reshape(B, S, nhead, dh).transpose(0, 2, 1, 3)   # [B, H, S, dh]

    qh, kh, vh = split_heads(q), split_heads(k), split_heads(v)
    s = jnp.einsum('bhqd,bhkd->bhqk', qh, kh)
    p = jax.nn.softmax(s, axis=-1)
    attw = jnp.mean(p, axis=1)                                    # [B, S, S]
    o = jnp.einsum('bhqk,bhkd->bhqd', p, vh).transpose(0, 2, 1, 3).reshape(B, S, D)

    attn_out = o @ wo + bo
    x1 = _layernorm(src + attn_out, ln[0:1, :], ln[1:2, :])
    ff = _gelu(x1 @ w1 + b1) @ w2 + b2
    out = _layernorm(x1 + ff, ln[2:3, :], ln[3:4, :])
    return out, attw


# ----------------------------------- main -----------------------------------

if __name__ == "__main__":
    B, S, D_MODEL, NHEAD, DIM_FF = 2, 8, 128, 8, 256

    key = jax.random.PRNGKey(0)
    k_src, k_params = jax.random.split(key)
    src = jax.random.normal(k_src, (B, S, D_MODEL), jnp.float32)
    params = init_params(k_params, D_MODEL, DIM_FF)

    out, attw = self_attention_block(src, params, nhead=NHEAD)
    jax.block_until_ready((out, attw))

    ref_out, ref_attw = reference_forward(src, params, nhead=NHEAD)
    assert out.shape == (B, S, D_MODEL) and attw.shape == (B, S, S)
    assert jnp.allclose(out, ref_out, rtol=2e-3, atol=2e-3)
    assert jnp.allclose(attw, ref_attw, rtol=2e-3, atol=2e-3)
    # attention rows sum to 1
    assert jnp.allclose(jnp.sum(attw, axis=-1), jnp.ones((B, S)), atol=1e-4)

    print("KERNEL_OK")
</pallas_src>

<mosaic_0001>
module attributes {stable_mosaic.version = 11 : i64} {
  func.func @_self_attention_block_kernel(%arg0: i32, %arg1: memref<1x8x128xf32, #tpu.memory_space<vmem>>, %arg2: memref<128x384xf32, #tpu.memory_space<vmem>>, %arg3: memref<1x384xf32, #tpu.memory_space<vmem>>, %arg4: memref<128x128xf32, #tpu.memory_space<vmem>>, %arg5: memref<1x128xf32, #tpu.memory_space<vmem>>, %arg6: memref<128x256xf32, #tpu.memory_space<vmem>>, %arg7: memref<1x256xf32, #tpu.memory_space<vmem>>, %arg8: memref<256x128xf32, #tpu.memory_space<vmem>>, %arg9: memref<1x128xf32, #tpu.memory_space<vmem>>, %arg10: memref<4x128xf32, #tpu.memory_space<vmem>>, %arg11: memref<1x8x128xf32, #tpu.memory_space<vmem>>, %arg12: memref<1x8x8xf32, #tpu.memory_space<vmem>>) attributes {dimension_semantics = [#tpu.dimension_semantics<parallel>], iteration_bounds = array<i64: 2>, scalar_prefetch = 0 : i64, scratch_operands = 0 : i64, tpu.core_type = #tpu.core_type<tc>, window_params = [{transform_indices = @transform_0, window_bounds = array<i64: 1, 8, 128>}, {pipeline_mode = #tpu.pipeline_mode<synchronous>, transform_indices = @transform_1, window_bounds = array<i64: 128, 384>}, {pipeline_mode = #tpu.pipeline_mode<synchronous>, transform_indices = @transform_2, window_bounds = array<i64: 1, 384>}, {pipeline_mode = #tpu.pipeline_mode<synchronous>, transform_indices = @transform_3, window_bounds = array<i64: 128, 128>}, {pipeline_mode = #tpu.pipeline_mode<synchronous>, transform_indices = @transform_4, window_bounds = array<i64: 1, 128>}, {pipeline_mode = #tpu.pipeline_mode<synchronous>, transform_indices = @transform_5, window_bounds = array<i64: 128, 256>}, {pipeline_mode = #tpu.pipeline_mode<synchronous>, transform_indices = @transform_6, window_bounds = array<i64: 1, 256>}, {pipeline_mode = #tpu.pipeline_mode<synchronous>, transform_indices = @transform_7, window_bounds = array<i64: 256, 128>}, {pipeline_mode = #tpu.pipeline_mode<synchronous>, transform_indices = @transform_8, window_bounds = array<i64: 1, 128>}, {pipeline_mode = #tpu.pipeline_mode<synchronous>, transform_indices = @transform_9, window_bounds = array<i64: 4, 128>}, {transform_indices = @transform_10, window_bounds = array<i64: 1, 8, 128>}, {transform_indices = @transform_11, window_bounds = array<i64: 1, 8, 8>}]} {
    %c0 = arith.constant 0 : index
    %c0_0 = arith.constant 0 : index
    %c0_1 = arith.constant 0 : index
    %0 = vector.load %arg1[%c0, %c0_0, %c0_1] : memref<1x8x128xf32, #tpu.memory_space<vmem>>, vector<1x8x128xf32>
    %1 = vector.shape_cast %0 : vector<1x8x128xf32> to vector<8x128xf32>
    %c0_2 = arith.constant 0 : index
    %c0_3 = arith.constant 0 : index
    %2 = vector.load %arg2[%c0_2, %c0_3] : memref<128x384xf32, #tpu.memory_space<vmem>>, vector<128x384xf32>
    %cst = arith.constant dense<0.000000e+00> : vector<8x384xf32>
    %3 = tpu.matmul %1, %2, %cst {dimension_numbers = #tpu.dot_dimension_numbers<[1], [0], [0], [1], [0, 0, 1, 1], [], []>} : vector<8x128xf32>, vector<128x384xf32>, vector<8x384xf32> -> vector<8x384xf32>
    %c0_4 = arith.constant 0 : index
    %c0_5 = arith.constant 0 : index
    %4 = vector.load %arg3[%c0_4, %c0_5] : memref<1x384xf32, #tpu.memory_space<vmem>>, vector<1x384xf32>
    %5 = vector.broadcast %4 : vector<1x384xf32> to vector<8x384xf32>
    %6 = arith.addf %3, %5 : vector<8x384xf32>
    %7 = vector.extract_strided_slice %6 {offsets = [0, 0], sizes = [8, 128], strides = [1, 1]} : vector<8x384xf32> to vector<8x128xf32>
    %cst_6 = arith.constant 2.500000e-01 : f32
    %8 = vector.broadcast %cst_6 : f32 to vector<8x128xf32>
    %9 = arith.mulf %7, %8 : vector<8x128xf32>
    %10 = vector.extract_strided_slice %6 {offsets = [0, 128], sizes = [8, 128], strides = [1, 1]} : vector<8x384xf32> to vector<8x128xf32>
    %11 = vector.extract_strided_slice %6 {offsets = [0, 256], sizes = [8, 128], strides = [1, 1]} : vector<8x384xf32> to vector<8x128xf32>
    %cst_7 = arith.constant 0.000000e+00 : f32
    %12 = vector.broadcast %cst_7 : f32 to vector<8x8xf32>
    %13 = vector.extract_strided_slice %9 {offsets = [0, 0], sizes = [8, 16], strides = [1, 1]} : vector<8x128xf32> to vector<8x16xf32>
    %14 = vector.extract_strided_slice %10 {offsets = [0, 0], sizes = [8, 16], strides = [1, 1]} : vector<8x128xf32> to vector<8x16xf32>
    %15 = vector.extract_strided_slice %11 {offsets = [0, 0], sizes = [8, 16], strides = [1, 1]} : vector<8x128xf32> to vector<8x16xf32>
    %cst_8 = arith.constant dense<0.000000e+00> : vector<8x8xf32>
    %16 = tpu.matmul %13, %14, %cst_8 {dimension_numbers = #tpu.dot_dimension_numbers<[1], [1], [0], [0], [0, 0, 1, 0], [], []>} : vector<8x16xf32>, vector<8x16xf32>, vector<8x8xf32> -> vector<8x8xf32>
    %cst_9 = arith.constant dense<0xFF800000> : vector<8xf32>
    %17 = vector.multi_reduction <maximumf>, %16, %cst_9 [1] : vector<8x8xf32> to vector<8xf32>
    %18 = vector.shape_cast %17 : vector<8xf32> to vector<8x1xf32>
    %19 = vector.broadcast %18 : vector<8x1xf32> to vector<8x8xf32>
    %20 = arith.subf %16, %19 : vector<8x8xf32>
    %21 = math.exp %20 : vector<8x8xf32>
    %cst_10 = arith.constant dense<0.000000e+00> : vector<8xf32>
    %22 = vector.multi_reduction <add>, %21, %cst_10 [1] : vector<8x8xf32> to vector<8xf32>
    %23 = vector.shape_cast %22 : vector<8xf32> to vector<8x1xf32>
    %24 = vector.broadcast %23 : vector<8x1xf32> to vector<8x8xf32>
    %25 = arith.divf %21, %24 : vector<8x8xf32>
    %26 = arith.addf %12, %25 : vector<8x8xf32>
    %cst_11 = arith.constant dense<0.000000e+00> : vector<8x16xf32>
    %27 = tpu.matmul %25, %15, %cst_11 {dimension_numbers = #tpu.dot_dimension_numbers<[1], [0], [0], [1], [0, 0, 1, 1], [], []>} : vector<8x8xf32>, vector<8x16xf32>, vector<8x16xf32> -> vector<8x16xf32>
    %28 = vector.extract_strided_slice %9 {offsets = [0, 16], sizes = [8, 16], strides = [1, 1]} : vector<8x128xf32> to vector<8x16xf32>
    %29 = vector.extract_strided_slice %10 {offsets = [0, 16], sizes = [8, 16], strides = [1, 1]} : vector<8x128xf32> to vector<8x16xf32>
    %30 = vector.extract_strided_slice %11 {offsets = [0, 16], sizes = [8, 16], strides = [1, 1]} : vector<8x128xf32> to vector<8x16xf32>
    %cst_12 = arith.constant dense<0.000000e+00> : vector<8x8xf32>
    %31 = tpu.matmul %28, %29, %cst_12 {dimension_numbers = #tpu.dot_dimension_numbers<[1], [1], [0], [0], [0, 0, 1, 0], [], []>} : vector<8x16xf32>, vector<8x16xf32>, vector<8x8xf32> -> vector<8x8xf32>
    %cst_13 = arith.constant dense<0xFF800000> : vector<8xf32>
    %32 = vector.multi_reduction <maximumf>, %31, %cst_13 [1] : vector<8x8xf32> to vector<8xf32>
    %33 = vector.shape_cast %32 : vector<8xf32> to vector<8x1xf32>
    %34 = vector.broadcast %33 : vector<8x1xf32> to vector<8x8xf32>
    %35 = arith.subf %31, %34 : vector<8x8xf32>
    %36 = math.exp %35 : vector<8x8xf32>
    %cst_14 = arith.constant dense<0.000000e+00> : vector<8xf32>
    %37 = vector.multi_reduction <add>, %36, %cst_14 [1] : vector<8x8xf32> to vector<8xf32>
    %38 = vector.shape_cast %37 : vector<8xf32> to vector<8x1xf32>
    %39 = vector.broadcast %38 : vector<8x1xf32> to vector<8x8xf32>
    %40 = arith.divf %36, %39 : vector<8x8xf32>
    %41 = arith.addf %26, %40 : vector<8x8xf32>
    %cst_15 = arith.constant dense<0.000000e+00> : vector<8x16xf32>
    %42 = tpu.matmul %40, %30, %cst_15 {dimension_numbers = #tpu.dot_dimension_numbers<[1], [0], [0], [1], [0, 0, 1, 1], [], []>} : vector<8x8xf32>, vector<8x16xf32>, vector<8x16xf32> -> vector<8x16xf32>
    %43 = vector.extract_strided_slice %9 {offsets = [0, 32], sizes = [8, 16], strides = [1, 1]} : vector<8x128xf32> to vector<8x16xf32>
    %44 = vector.extract_strided_slice %10 {offsets = [0, 32], sizes = [8, 16], strides = [1, 1]} : vector<8x128xf32> to vector<8x16xf32>
    %45 = vector.extract_strided_slice %11 {offsets = [0, 32], sizes = [8, 16], strides = [1, 1]} : vector<8x128xf32> to vector<8x16xf32>
    %cst_16 = arith.constant dense<0.000000e+00> : vector<8x8xf32>
    %46 = tpu.matmul %43, %44, %cst_16 {dimension_numbers = #tpu.dot_dimension_numbers<[1], [1], [0], [0], [0, 0, 1, 0], [], []>} : vector<8x16xf32>, vector<8x16xf32>, vector<8x8xf32> -> vector<8x8xf32>
    %cst_17 = arith.constant dense<0xFF800000> : vector<8xf32>
    %47 = vector.multi_reduction <maximumf>, %46, %cst_17 [1] : vector<8x8xf32> to vector<8xf32>
    %48 = vector.shape_cast %47 : vector<8xf32> to vector<8x1xf32>
    %49 = vector.broadcast %48 : vector<8x1xf32> to vector<8x8xf32>
    %50 = arith.subf %46, %49 : vector<8x8xf32>
    %51 = math.exp %50 : vector<8x8xf32>
    %cst_18 = arith.constant dense<0.000000e+00> : vector<8xf32>
    %52 = vector.multi_reduction <add>, %51, %cst_18 [1] : vector<8x8xf32> to vector<8xf32>
    %53 = vector.shape_cast %52 : vector<8xf32> to vector<8x1xf32>
    %54 = vector.broadcast %53 : vector<8x1xf32> to vector<8x8xf32>
    %55 = arith.divf %51, %54 : vector<8x8xf32>
    %56 = arith.addf %41, %55 : vector<8x8xf32>
    %cst_19 = arith.constant dense<0.000000e+00> : vector<8x16xf32>
    %57 = tpu.matmul %55, %45, %cst_19 {dimension_numbers = #tpu.dot_dimension_numbers<[1], [0], [0], [1], [0, 0, 1, 1], [], []>} : vector<8x8xf32>, vector<8x16xf32>, vector<8x16xf32> -> vector<8x16xf32>
    %58 = vector.extract_strided_slice %9 {offsets = [0, 48], sizes = [8, 16], strides = [1, 1]} : vector<8x128xf32> to vector<8x16xf32>
    %59 = vector.extract_strided_slice %10 {offsets = [0, 48], sizes = [8, 16], strides = [1, 1]} : vector<8x128xf32> to vector<8x16xf32>
    %60 = vector.extract_strided_slice %11 {offsets = [0, 48], sizes = [8, 16], strides = [1, 1]} : vector<8x128xf32> to vector<8x16xf32>
    %cst_20 = arith.constant dense<0.000000e+00> : vector<8x8xf32>
    %61 = tpu.matmul %58, %59, %cst_20 {dimension_numbers = #tpu.dot_dimension_numbers<[1], [1], [0], [0], [0, 0, 1, 0], [], []>} : vector<8x16xf32>, vector<8x16xf32>, vector<8x8xf32> -> vector<8x8xf32>
    %cst_21 = arith.constant dense<0xFF800000> : vector<8xf32>
    %62 = vector.multi_reduction <maximumf>, %61, %cst_21 [1] : vector<8x8xf32> to vector<8xf32>
    %63 = vector.shape_cast %62 : vector<8xf32> to vector<8x1xf32>
    %64 = vector.broadcast %63 : vector<8x1xf32> to vector<8x8xf32>
    %65 = arith.subf %61, %64 : vector<8x8xf32>
    %66 = math.exp %65 : vector<8x8xf32>
    %cst_22 = arith.constant dense<0.000000e+00> : vector<8xf32>
    %67 = vector.multi_reduction <add>, %66, %cst_22 [1] : vector<8x8xf32> to vector<8xf32>
    %68 = vector.shape_cast %67 : vector<8xf32> to vector<8x1xf32>
    %69 = vector.broadcast %68 : vector<8x1xf32> to vector<8x8xf32>
    %70 = arith.divf %66, %69 : vector<8x8xf32>
    %71 = arith.addf %56, %70 : vector<8x8xf32>
    %cst_23 = arith.constant dense<0.000000e+00> : vector<8x16xf32>
    %72 = tpu.matmul %70, %60, %cst_23 {dimension_numbers = #tpu.dot_dimension_numbers<[1], [0], [0], [1], [0, 0, 1, 1], [], []>} : vector<8x8xf32>, vector<8x16xf32>, vector<8x16xf32> -> vector<8x16xf32>
    %73 = vector.extract_strided_slice %9 {offsets = [0, 64], sizes = [8, 16], strides = [1, 1]} : vector<8x128xf32> to vector<8x16xf32>
    %74 = vector.extract_strided_slice %10 {offsets = [0, 64], sizes = [8, 16], strides = [1, 1]} : vector<8x128xf32> to vector<8x16xf32>
    %75 = vector.extract_strided_slice %11 {offsets = [0, 64], sizes = [8, 16], strides = [1, 1]} : vector<8x128xf32> to vector<8x16xf32>
    %cst_24 = arith.constant dense<0.000000e+00> : vector<8x8xf32>
    %76 = tpu.matmul %73, %74, %cst_24 {dimension_numbers = #tpu.dot_dimension_numbers<[1], [1], [0], [0], [0, 0, 1, 0], [], []>} : vector<8x16xf32>, vector<8x16xf32>, vector<8x8xf32> -> vector<8x8xf32>
    %cst_25 = arith.constant dense<0xFF800000> : vector<8xf32>
    %77 = vector.multi_reduction <maximumf>, %76, %cst_25 [1] : vector<8x8xf32> to vector<8xf32>
    %78 = vector.shape_cast %77 : vector<8xf32> to vector<8x1xf32>
    %79 = vector.broadcast %78 : vector<8x1xf32> to vector<8x8xf32>
    %80 = arith.subf %76, %79 : vector<8x8xf32>
    %81 = math.exp %80 : vector<8x8xf32>
    %cst_26 = arith.constant dense<0.000000e+00> : vector<8xf32>
    %82 = vector.multi_reduction <add>, %81, %cst_26 [1] : vector<8x8xf32> to vector<8xf32>
    %83 = vector.shape_cast %82 : vector<8xf32> to vector<8x1xf32>
    %84 = vector.broadcast %83 : vector<8x1xf32> to vector<8x8xf32>
    %85 = arith.divf %81, %84 : vector<8x8xf32>
    %86 = arith.addf %71, %85 : vector<8x8xf32>
    %cst_27 = arith.constant dense<0.000000e+00> : vector<8x16xf32>
    %87 = tpu.matmul %85, %75, %cst_27 {dimension_numbers = #tpu.dot_dimension_numbers<[1], [0], [0], [1], [0, 0, 1, 1], [], []>} : vector<8x8xf32>, vector<8x16xf32>, vector<8x16xf32> -> vector<8x16xf32>
    %88 = vector.extract_strided_slice %9 {offsets = [0, 80], sizes = [8, 16], strides = [1, 1]} : vector<8x128xf32> to vector<8x16xf32>
    %89 = vector.extract_strided_slice %10 {offsets = [0, 80], sizes = [8, 16], strides = [1, 1]} : vector<8x128xf32> to vector<8x16xf32>
    %90 = vector.extract_strided_slice %11 {offsets = [0, 80], sizes = [8, 16], strides = [1, 1]} : vector<8x128xf32> to vector<8x16xf32>
    %cst_28 = arith.constant dense<0.000000e+00> : vector<8x8xf32>
    %91 = tpu.matmul %88, %89, %cst_28 {dimension_numbers = #tpu.dot_dimension_numbers<[1], [1], [0], [0], [0, 0, 1, 0], [], []>} : vector<8x16xf32>, vector<8x16xf32>, vector<8x8xf32> -> vector<8x8xf32>
    %cst_29 = arith.constant dense<0xFF800000> : vector<8xf32>
    %92 = vector.multi_reduction <maximumf>, %91, %cst_29 [1] : vector<8x8xf32> to vector<8xf32>
    %93 = vector.shape_cast %92 : vector<8xf32> to vector<8x1xf32>
    %94 = vector.broadcast %93 : vector<8x1xf32> to vector<8x8xf32>
    %95 = arith.subf %91, %94 : vector<8x8xf32>
    %96 = math.exp %95 : vector<8x8xf32>
    %cst_30 = arith.constant dense<0.000000e+00> : vector<8xf32>
    %97 = vector.multi_reduction <add>, %96, %cst_30 [1] : vector<8x8xf32> to vector<8xf32>
    %98 = vector.shape_cast %97 : vector<8xf32> to vector<8x1xf32>
    %99 = vector.broadcast %98 : vector<8x1xf32> to vector<8x8xf32>
    %100 = arith.divf %96, %99 : vector<8x8xf32>
    %101 = arith.addf %86, %100 : vector<8x8xf32>
    %cst_31 = arith.constant dense<0.000000e+00> : vector<8x16xf32>
    %102 = tpu.matmul %100, %90, %cst_31 {dimension_numbers = #tpu.dot_dimension_numbers<[1], [0], [0], [1], [0, 0, 1, 1], [], []>} : vector<8x8xf32>, vector<8x16xf32>, vector<8x16xf32> -> vector<8x16xf32>
    %103 = vector.extract_strided_slice %9 {offsets = [0, 96], sizes = [8, 16], strides = [1, 1]} : vector<8x128xf32> to vector<8x16xf32>
    %104 = vector.extract_strided_slice %10 {offsets = [0, 96], sizes = [8, 16], strides = [1, 1]} : vector<8x128xf32> to vector<8x16xf32>
    %105 = vector.extract_strided_slice %11 {offsets = [0, 96], sizes = [8, 16], strides = [1, 1]} : vector<8x128xf32> to vector<8x16xf32>
    %cst_32 = arith.constant dense<0.000000e+00> : vector<8x8xf32>
    %106 = tpu.matmul %103, %104, %cst_32 {dimension_numbers = #tpu.dot_dimension_numbers<[1], [1], [0], [0], [0, 0, 1, 0], [], []>} : vector<8x16xf32>, vector<8x16xf32>, vector<8x8xf32> -> vector<8x8xf32>
    %cst_33 = arith.constant dense<0xFF800000> : vector<8xf32>
    %107 = vector.multi_reduction <maximumf>, %106, %cst_33 [1] : vector<8x8xf32> to vector<8xf32>
    %108 = vector.shape_cast %107 : vector<8xf32> to vector<8x1xf32>
    %109 = vector.broadcast %108 : vector<8x1xf32> to vector<8x8xf32>
    %110 = arith.subf %106, %109 : vector<8x8xf32>
    %111 = math.exp %110 : vector<8x8xf32>
    %cst_34 = arith.constant dense<0.000000e+00> : vector<8xf32>
    %112 = vector.multi_reduction <add>, %111, %cst_34 [1] : vector<8x8xf32> to vector<8xf32>
    %113 = vector.shape_cast %112 : vector<8xf32> to vector<8x1xf32>
    %114 = vector.broadcast %113 : vector<8x1xf32> to vector<8x8xf32>
    %115 = arith.divf %111, %114 : vector<8x8xf32>
    %116 = arith.addf %101, %115 : vector<8x8xf32>
    %cst_35 = arith.constant dense<0.000000e+00> : vector<8x16xf32>
    %117 = tpu.matmul %115, %105, %cst_35 {dimension_numbers = #tpu.dot_dimension_numbers<[1], [0], [0], [1], [0, 0, 1, 1], [], []>} : vector<8x8xf32>, vector<8x16xf32>, vector<8x16xf32> -> vector<8x16xf32>
    %118 = vector.extract_strided_slice %9 {offsets = [0, 112], sizes = [8, 16], strides = [1, 1]} : vector<8x128xf32> to vector<8x16xf32>
    %119 = vector.extract_strided_slice %10 {offsets = [0, 112], sizes = [8, 16], strides = [1, 1]} : vector<8x128xf32> to vector<8x16xf32>
    %120 = vector.extract_strided_slice %11 {offsets = [0, 112], sizes = [8, 16], strides = [1, 1]} : vector<8x128xf32> to vector<8x16xf32>
    %cst_36 = arith.constant dense<0.000000e+00> : vector<8x8xf32>
    %121 = tpu.matmul %118, %119, %cst_36 {dimension_numbers = #tpu.dot_dimension_numbers<[1], [1], [0], [0], [0, 0, 1, 0], [], []>} : vector<8x16xf32>, vector<8x16xf32>, vector<8x8xf32> -> vector<8x8xf32>
    %cst_37 = arith.constant dense<0xFF800000> : vector<8xf32>
    %122 = vector.multi_reduction <maximumf>, %121, %cst_37 [1] : vector<8x8xf32> to vector<8xf32>
    %123 = vector.shape_cast %122 : vector<8xf32> to vector<8x1xf32>
    %124 = vector.broadcast %123 : vector<8x1xf32> to vector<8x8xf32>
    %125 = arith.subf %121, %124 : vector<8x8xf32>
    %126 = math.exp %125 : vector<8x8xf32>
    %cst_38 = arith.constant dense<0.000000e+00> : vector<8xf32>
    %127 = vector.multi_reduction <add>, %126, %cst_38 [1] : vector<8x8xf32> to vector<8xf32>
    %128 = vector.shape_cast %127 : vector<8xf32> to vector<8x1xf32>
    %129 = vector.broadcast %128 : vector<8x1xf32> to vector<8x8xf32>
    %130 = arith.divf %126, %129 : vector<8x8xf32>
    %131 = arith.addf %116, %130 : vector<8x8xf32>
    %cst_39 = arith.constant dense<0.000000e+00> : vector<8x16xf32>
    %132 = tpu.matmul %130, %120, %cst_39 {dimension_numbers = #tpu.dot_dimension_numbers<[1], [0], [0], [1], [0, 0, 1, 1], [], []>} : vector<8x8xf32>, vector<8x16xf32>, vector<8x16xf32> -> vector<8x16xf32>
    %133 = tpu.concatenate %27, %42, %57, %72, %87, %102, %117, %132 in 1 : vector<8x16xf32>, vector<8x16xf32>, vector<8x16xf32>, vector<8x16xf32>, vector<8x16xf32>, vector<8x16xf32>, vector<8x16xf32>, vector<8x16xf32> -> vector<8x128xf32>
    %cst_40 = arith.constant 1.250000e-01 : f32
    %134 = vector.broadcast %cst_40 : f32 to vector<8x8xf32>
    %135 = arith.mulf %131, %134 : vector<8x8xf32>
    %c0_41 = arith.constant 0 : index
    %c0_42 = arith.constant 0 : index
    %c0_43 = arith.constant 0 : index
    %136 = vector.load %arg12[%c0_41, %c0_42, %c0_43] : memref<1x8x8xf32, #tpu.memory_space<vmem>>, vector<1x8x8xf32>
    %137 = vector.shape_cast %136 : vector<1x8x8xf32> to vector<8x8xf32>
    %138 = vector.shape_cast %135 : vector<8x8xf32> to vector<1x8x8xf32>
    tpu.vector_store %arg12[%c0_41, %c0_42, %c0_43], %138 {strides = array<i32>} : memref<1x8x8xf32, #tpu.memory_space<vmem>>, vector<1x8x8xf32>,
    %c0_44 = arith.constant 0 : index
    %c0_45 = arith.constant 0 : index
    %139 = vector.load %arg4[%c0_44, %c0_45] : memref<128x128xf32, #tpu.memory_space<vmem>>, vector<128x128xf32>
    %cst_46 = arith.constant dense<0.000000e+00> : vector<8x128xf32>
    %140 = tpu.matmul %133, %139, %cst_46 {dimension_numbers = #tpu.dot_dimension_numbers<[1], [0], [0], [1], [0, 0, 1, 1], [], []>} : vector<8x128xf32>, vector<128x128xf32>, vector<8x128xf32> -> vector<8x128xf32>
    %c0_47 = arith.constant 0 : index
    %c0_48 = arith.constant 0 : index
    %141 = vector.load %arg5[%c0_47, %c0_48] : memref<1x128xf32, #tpu.memory_space<vmem>>, vector<1x128xf32>
    %142 = vector.broadcast %141 : vector<1x128xf32> to vector<8x128xf32>
    %143 = arith.addf %140, %142 : vector<8x128xf32>
    %c0_49 = arith.constant 0 : index
    %c0_50 = arith.constant 0 : index
    %144 = vector.load %arg10[%c0_49, %c0_50] : memref<4x128xf32, #tpu.memory_space<vmem>>, vector<4x128xf32>
    %145 = arith.addf %1, %143 : vector<8x128xf32>
    %146 = vector.extract_strided_slice %144 {offsets = [0, 0], sizes = [1, 128], strides = [1, 1]} : vector<4x128xf32> to vector<1x128xf32>
    %147 = vector.extract_strided_slice %144 {offsets = [1, 0], sizes = [1, 128], strides = [1, 1]} : vector<4x128xf32> to vector<1x128xf32>
    %cst_51 = arith.constant dense<0.000000e+00> : vector<8xf32>
    %148 = vector.multi_reduction <add>, %145, %cst_51 [1] : vector<8x128xf32> to vector<8xf32>
    %149 = vector.shape_cast %148 : vector<8xf32> to vector<8x1xf32>
    %cst_52 = arith.constant 1.280000e+02 : f32
    %150 = vector.broadcast %cst_52 : f32 to vector<8x1xf32>
    %151 = arith.divf %149, %150 : vector<8x1xf32>
    %152 = vector.broadcast %151 : vector<8x1xf32> to vector<8x128xf32>
    %153 = arith.subf %145, %152 : vector<8x128xf32>
    %154 = arith.mulf %153, %153 : vector<8x128xf32>
    %cst_53 = arith.constant dense<0.000000e+00> : vector<8xf32>
    %155 = vector.multi_reduction <add>, %154, %cst_53 [1] : vector<8x128xf32> to vector<8xf32>
    %156 = vector.shape_cast %155 : vector<8xf32> to vector<8x1xf32>
    %cst_54 = arith.constant 1.280000e+02 : f32
    %157 = vector.broadcast %cst_54 : f32 to vector<8x1xf32>
    %158 = arith.divf %156, %157 : vector<8x1xf32>
    %159 = vector.broadcast %151 : vector<8x1xf32> to vector<8x128xf32>
    %160 = arith.subf %145, %159 : vector<8x128xf32>
    %cst_55 = arith.constant 9.99999974E-6 : f32
    %161 = vector.broadcast %cst_55 : f32 to vector<8x1xf32>
    %162 = arith.addf %158, %161 : vector<8x1xf32>
    %163 = math.rsqrt %162 : vector<8x1xf32>
    %164 = vector.broadcast %163 : vector<8x1xf32> to vector<8x128xf32>
    %165 = arith.mulf %160, %164 : vector<8x128xf32>
    %166 = vector.broadcast %146 : vector<1x128xf32> to vector<8x128xf32>
    %167 = arith.mulf %165, %166 : vector<8x128xf32>
    %168 = vector.broadcast %147 : vector<1x128xf32> to vector<8x128xf32>
    %169 = arith.addf %167, %168 : vector<8x128xf32>
    %c0_56 = arith.constant 0 : index
    %c0_57 = arith.constant 0 : index
    %170 = vector.load %arg6[%c0_56, %c0_57] : memref<128x256xf32, #tpu.memory_space<vmem>>, vector<128x256xf32>
    %cst_58 = arith.constant dense<0.000000e+00> : vector<8x256xf32>
    %171 = tpu.matmul %169, %170, %cst_58 {dimension_numbers = #tpu.dot_dimension_numbers<[1], [0], [0], [1], [0, 0, 1, 1], [], []>} : vector<8x128xf32>, vector<128x256xf32>, vector<8x256xf32> -> vector<8x256xf32>
    %c0_59 = arith.constant 0 : index
    %c0_60 = arith.constant 0 : index
    %172 = vector.load %arg7[%c0_59, %c0_60] : memref<1x256xf32, #tpu.memory_space<vmem>>, vector<1x256xf32>
    %173 = vector.broadcast %172 : vector<1x256xf32> to vector<8x256xf32>
    %174 = arith.addf %171, %173 : vector<8x256xf32>
    %cst_61 = arith.constant 5.000000e-01 : f32
    %175 = vector.broadcast %cst_61 : f32 to vector<8x256xf32>
    %176 = arith.mulf %175, %174 : vector<8x256xf32>
    %cst_62 = arith.constant 0.707106769 : f32
    %177 = vector.broadcast %cst_62 : f32 to vector<8x256xf32>
    %178 = arith.mulf %174, %177 : vector<8x256xf32>
    %179 = math.erf %178 : vector<8x256xf32>
    %cst_63 = arith.constant 1.000000e+00 : f32
    %180 = vector.broadcast %cst_63 : f32 to vector<8x256xf32>
    %181 = arith.addf %180, %179 : vector<8x256xf32>
    %182 = arith.mulf %176, %181 : vector<8x256xf32>
    %c0_64 = arith.constant 0 : index
    %c0_65 = arith.constant 0 : index
    %183 = vector.load %arg8[%c0_64, %c0_65] : memref<256x128xf32, #tpu.memory_space<vmem>>, vector<256x128xf32>
    %cst_66 = arith.constant dense<0.000000e+00> : vector<8x128xf32>
    %184 = tpu.matmul %182, %183, %cst_66 {dimension_numbers = #tpu.dot_dimension_numbers<[1], [0], [0], [1], [0, 0, 1, 1], [], []>} : vector<8x256xf32>, vector<256x128xf32>, vector<8x128xf32> -> vector<8x128xf32>
    %c0_67 = arith.constant 0 : index
    %c0_68 = arith.constant 0 : index
    %185 = vector.load %arg9[%c0_67, %c0_68] : memref<1x128xf32, #tpu.memory_space<vmem>>, vector<1x128xf32>
    %186 = vector.broadcast %185 : vector<1x128xf32> to vector<8x128xf32>
    %187 = arith.addf %184, %186 : vector<8x128xf32>
    %188 = arith.addf %169, %187 : vector<8x128xf32>
    %189 = vector.extract_strided_slice %144 {offsets = [2, 0], sizes = [1, 128], strides = [1, 1]} : vector<4x128xf32> to vector<1x128xf32>
    %190 = vector.extract_strided_slice %144 {offsets = [3, 0], sizes = [1, 128], strides = [1, 1]} : vector<4x128xf32> to vector<1x128xf32>
    %cst_69 = arith.constant dense<0.000000e+00> : vector<8xf32>
    %191 = vector.multi_reduction <add>, %188, %cst_69 [1] : vector<8x128xf32> to vector<8xf32>
    %192 = vector.shape_cast %191 : vector<8xf32> to vector<8x1xf32>
    %cst_70 = arith.constant 1.280000e+02 : f32
    %193 = vector.broadcast %cst_70 : f32 to vector<8x1xf32>
    %194 = arith.divf %192, %193 : vector<8x1xf32>
    %195 = vector.broadcast %194 : vector<8x1xf32> to vector<8x128xf32>
    %196 = arith.subf %188, %195 : vector<8x128xf32>
    %197 = arith.mulf %196, %196 : vector<8x128xf32>
    %cst_71 = arith.constant dense<0.000000e+00> : vector<8xf32>
    %198 = vector.multi_reduction <add>, %197, %cst_71 [1] : vector<8x128xf32> to vector<8xf32>
    %199 = vector.shape_cast %198 : vector<8xf32> to vector<8x1xf32>
    %cst_72 = arith.constant 1.280000e+02 : f32
    %200 = vector.broadcast %cst_72 : f32 to vector<8x1xf32>
    %201 = arith.divf %199, %200 : vector<8x1xf32>
    %202 = vector.broadcast %194 : vector<8x1xf32> to vector<8x128xf32>
    %203 = arith.subf %188, %202 : vector<8x128xf32>
    %cst_73 = arith.constant 9.99999974E-6 : f32
    %204 = vector.broadcast %cst_73 : f32 to vector<8x1xf32>
    %205 = arith.addf %201, %204 : vector<8x1xf32>
    %206 = math.rsqrt %205 : vector<8x1xf32>
    %207 = vector.broadcast %206 : vector<8x1xf32> to vector<8x128xf32>
    %208 = arith.mulf %203, %207 : vector<8x128xf32>
    %209 = vector.broadcast %189 : vector<1x128xf32> to vector<8x128xf32>
    %210 = arith.mulf %208, %209 : vector<8x128xf32>
    %211 = vector.broadcast %190 : vector<1x128xf32> to vector<8x128xf32>
    %212 = arith.addf %210, %211 : vector<8x128xf32>
    %c0_74 = arith.constant 0 : index
    %c0_75 = arith.constant 0 : index
    %c0_76 = arith.constant 0 : index
    %213 = vector.load %arg11[%c0_74, %c0_75, %c0_76] : memref<1x8x128xf32, #tpu.memory_space<vmem>>, vector<1x8x128xf32>
    %214 = vector.shape_cast %213 : vector<1x8x128xf32> to vector<8x128xf32>
    %215 = vector.shape_cast %212 : vector<8x128xf32> to vector<1x8x128xf32>
    tpu.vector_store %arg11[%c0_74, %c0_75, %c0_76], %215 {strides = array<i32>} : memref<1x8x128xf32, #tpu.memory_space<vmem>>, vector<1x8x128xf32>,
    return
  }
  func.func @transform_0(%arg0: i32) -> (i32, i32, i32) {
    %c0_i32 = arith.constant 0 : i32
    %c0_i32_0 = arith.constant 0 : i32
    %c0_i32_1 = arith.constant 0 : i32
    return %arg0, %c0_i32, %c0_i32_0 : i32, i32, i32
  }
  func.func @transform_1(%arg0: i32) -> (i32, i32) {
    %c0_i32 = arith.constant 0 : i32
    %c0_i32_0 = arith.constant 0 : i32
    %c0_i32_1 = arith.constant 0 : i32
    return %c0_i32, %c0_i32_0 : i32, i32
  }
  func.func @transform_2(%arg0: i32) -> (i32, i32) {
    %c0_i32 = arith.constant 0 : i32
    %c0_i32_0 = arith.constant 0 : i32
    %c0_i32_1 = arith.constant 0 : i32
    return %c0_i32, %c0_i32_0 : i32, i32
  }
  func.func @transform_3(%arg0: i32) -> (i32, i32) {
    %c0_i32 = arith.constant 0 : i32
    %c0_i32_0 = arith.constant 0 : i32
    %c0_i32_1 = arith.constant 0 : i32
    return %c0_i32, %c0_i32_0 : i32, i32
  }
  func.func @transform_4(%arg0: i32) -> (i32, i32) {
    %c0_i32 = arith.constant 0 : i32
    %c0_i32_0 = arith.constant 0 : i32
    %c0_i32_1 = arith.constant 0 : i32
    return %c0_i32, %c0_i32_0 : i32, i32
  }
  func.func @transform_5(%arg0: i32) -> (i32, i32) {
    %c0_i32 = arith.constant 0 : i32
    %c0_i32_0 = arith.constant 0 : i32
    %c0_i32_1 = arith.constant 0 : i32
    return %c0_i32, %c0_i32_0 : i32, i32
  }
  func.func @transform_6(%arg0: i32) -> (i32, i32) {
    %c0_i32 = arith.constant 0 : i32
    %c0_i32_0 = arith.constant 0 : i32
    %c0_i32_1 = arith.constant 0 : i32
    return %c0_i32, %c0_i32_0 : i32, i32
  }
  func.func @transform_7(%arg0: i32) -> (i32, i32) {
    %c0_i32 = arith.constant 0 : i32
    %c0_i32_0 = arith.constant 0 : i32
    %c0_i32_1 = arith.constant 0 : i32
    return %c0_i32, %c0_i32_0 : i32, i32
  }
  func.func @transform_8(%arg0: i32) -> (i32, i32) {
    %c0_i32 = arith.constant 0 : i32
    %c0_i32_0 = arith.constant 0 : i32
    %c0_i32_1 = arith.constant 0 : i32
    return %c0_i32, %c0_i32_0 : i32, i32
  }
  func.func @transform_9(%arg0: i32) -> (i32, i32) {
    %c0_i32 = arith.constant 0 : i32
    %c0_i32_0 = arith.constant 0 : i32
    %c0_i32_1 = arith.constant 0 : i32
    return %c0_i32, %c0_i32_0 : i32, i32
  }
  func.func @transform_10(%arg0: i32) -> (i32, i32, i32) {
    %c0_i32 = arith.constant 0 : i32
    %c0_i32_0 = arith.constant 0 : i32
    %c0_i32_1 = arith.constant 0 : i32
    return %arg0, %c0_i32, %c0_i32_0 : i32, i32, i32
  }
  func.func @transform_11(%arg0: i32) -> (i32, i32, i32) {
    %c0_i32 = arith.constant 0 : i32
    %c0_i32_0 = arith.constant 0 : i32
    %c0_i32_1 = arith.constant 0 : i32
    return %arg0, %c0_i32, %c0_i32_0 : i32, i32, i32
  }
}

</mosaic_0001>

<llo_original>
// kernel: tpu_custom_call.1
$region0: #{tpu_custom_call.1}
  #allocation0 [shape = 'u32[]', space=smem, size = 0x4, offset = 0x4, fixed_abs, tag = 'smem constant byte address 0x4 - core index']
  #allocation1 [shape = 'u32[144,128]{1,0:T(1,128)}', space=vmem, size = 0x12000, scoped, tag = 'internal scratch']
  %s0 = inlined_call_operand.hbm [shape: f32[2,8,128], index: 0, kind: input, shape index: {}]
  %s1 = inlined_call_operand.hbm [shape: f32[128,384], index: 1, kind: input, shape index: {}]
  %s2 = inlined_call_operand.vmem [shape: f32[1,384], index: 2, kind: input, shape index: {}]
  %s3 = inlined_call_operand.hbm [shape: f32[128,128], index: 3, kind: input, shape index: {}]
  %s4 = inlined_call_operand.vmem [shape: f32[1,128], index: 4, kind: input, shape index: {}]
  %s5 = inlined_call_operand.hbm [shape: f32[128,256], index: 5, kind: input, shape index: {}]
  %s6 = inlined_call_operand.vmem [shape: f32[1,256], index: 6, kind: input, shape index: {}]
  %s7 = inlined_call_operand.hbm [shape: f32[256,128], index: 7, kind: input, shape index: {}]
  %s8 = inlined_call_operand.vmem [shape: f32[1,128], index: 8, kind: input, shape index: {}]
  %s9 = inlined_call_operand.vmem [shape: f32[4,128], index: 9, kind: input, shape index: {}]
  %s10 = inlined_call_operand.hbm [shape: f32[2,8,128], index: 10, kind: output, shape index: {0}]
  %s11 = inlined_call_operand.hbm [shape: f32[2,8,8], index: 11, kind: output, shape index: {1}]
  %12 = xla_tuple %s10, %s11
  %s13 = sld [smem:[#allocation0]]
  $region101: #{tpu_custom_call.1} parent=0
    _
  %s15 = ssub.s32 1, %s13
  %s16 = scalar_select 0, %s15, %s13
  $region1: #{tpu_custom_call.1} parent=0
    #allocation2 [shape = 'u8[8192]{0}', space=vmem, size = 0x2000, scoped, tag = 'input window, operand 0']
    #allocation3 [shape = 's32[2]{0}', space=sflag, size = 0x8, scoped, tag = 'scoped memory for tpu_custom_call.1']
    #allocation4 [shape = 's32[2]{0}', space=sflag, size = 0x8, scoped, tag = 'scoped memory for tpu_custom_call.1']
    #allocation5 [shape = 'u8[196608]{0}', space=vmem, size = 0x30000, scoped, tag = 'input window, operand 1, single buffered']
    #allocation6 [shape = 's32[1]{0}', space=sflag, size = 0x4, scoped, tag = 'scoped memory for tpu_custom_call.1']
    #allocation7 [shape = 'u8[65536]{0}', space=vmem, size = 0x10000, scoped, tag = 'input window, operand 3, single buffered']
    #allocation8 [shape = 'u8[131072]{0}', space=vmem, size = 0x20000, scoped, tag = 'input window, operand 5, single buffered']
    #allocation9 [shape = 's32[1]{0}', space=sflag, size = 0x4, scoped, tag = 'scoped memory for tpu_custom_call.1']
    #allocation10 [shape = 'u8[131072]{0}', space=vmem, size = 0x20000, scoped, tag = 'input window, operand 7, single buffered']
    #allocation11 [shape = 'u8[8192]{0}', space=vmem, size = 0x2000, scoped, tag = 'output window, operand 0']
    #allocation12 [shape = 'u8[8192]{0}', space=vmem, size = 0x2000, scoped, tag = 'output window, operand 1']
    #allocation13 [shape = 's32[2]{0}', space=sflag, size = 0x8, scoped, tag = 'scoped memory for tpu_custom_call.1']
    %17 = vsyncpa [#allocation3], 0
    %s18 = scalar_lea.sflag [#allocation3], 1
    %19 = vsyncpa %s18, 0
    %20 = vsyncpa [#allocation6], 0
    %21 = vsyncpa [#allocation9], 0
    %22 = vsyncpa [#allocation4], 0
    %s23 = scalar_lea.sflag [#allocation4], 1
    %24 = vsyncpa %s23, 0
    %25 = vsyncpa [#allocation13], 0
    %s26 = scalar_lea.sflag [#allocation13], 1
    %27 = vsyncpa %s26, 0
    loop: start=0, step=1, limit=4
    $region2: #{tpu_custom_call.1} parent=1 // loop_pre_header
      _
    $region3: #{tpu_custom_call.1} parent=1 // loop_header
      %s29 = sphi 0, %s33
      %p30 = scmp.ge.s32.totalorder %s29, 4
      %s39 = sphi 0, %s41
      %s42 = sphi 0, %s39
      %s43 = sphi 0, %s42
      %s59 = sphi 0, %s43
      %s63 = sphi 0, %s63
      %s65 = sphi 0, %s63
      %s66 = sphi 0, %s65
      %s80 = sphi 0, %s66
      %s84 = sphi 0, %s84
      %s86 = sphi 0, %s84
      %s87 = sphi 0, %s86
      %s101 = sphi 0, %s87
      %s105 = sphi 0, %s105
      %s107 = sphi 0, %s105
      %s108 = sphi 0, %s107
      %s122 = sphi 0, %s108
      %s126 = sphi 0, %s126
      %s128 = sphi 0, %s126
      %s129 = sphi 0, %s128
      %s143 = sphi 0, %s129
      %s147 = sphi 0, %s147
      %s149 = sphi 0, %s147
      %s150 = sphi 0, %s149
      %s164 = sphi 0, %s150
      %s168 = sphi 0, %s168
      %s170 = sphi 0, %s168
      %s171 = sphi 0, %s170
      %s185 = sphi 0, %s171
      %s189 = sphi 0, %s189
      %s191 = sphi 0, %s189
      %s192 = sphi 0, %s191
      %s206 = sphi 0, %s192
      %s210 = sphi 0, %s210
      %s212 = sphi 0, %s210
      %s213 = sphi 0, %s212
      %s227 = sphi 0, %s213
      %s231 = sphi 0, %s231
      %s233 = sphi 0, %s231
      %s234 = sphi 0, %s233
      %s248 = sphi 0, %s234
      %s254 = sphi 0, %s256
      %s257 = sphi 0, %s254
      %s258 = sphi 0, %s257
      %s274 = sphi 0, %s258
      %s280 = sphi 0, %s282
      %s283 = sphi 0, %s280
      %s284 = sphi 0, %s283
      %s300 = sphi 0, %s284
    $region4: #{tpu_custom_call.1} parent=1 // loop_header_branch
      %32 = sbr.rel (%p30) target = $region8
    $region5: #{tpu_custom_call.1} parent=1 // loop_body
      %s34 = ssub.s32 %s29, 1
      %s35 = ssub.s32 %s29, 2
      %s36 = sadd.s32 %s29, 1
      %s37 = ssub.s32 %s29, %s36
      %p38 = scmp.eq.s32.totalorder %s37, 0
      %s40 = sadd.s32 %s39, 1
      %s41 = scalar_select %p38, %s39, %s40
      %p44 = pneg %p38
      %p45 = scmp.eq.s32.totalorder %s29, 1
      %p46 = por %p44, %p45
      %p47 = scmp.ne.s32.totalorder %s39, %s42
      %p48 = scmp.eq.s32.totalorder %s29, 0
      %p49 = por %p47, %p48
      %p50 = scmp.ne.s32.totalorder %s39, %s42
      %p51 = scmp.eq.s32.totalorder %s34, 1
      %p52 = por %p50, %p51
      %p53 = scmp.ne.s32.totalorder %s42, %s43
      %p54 = scmp.eq.s32.totalorder %s34, 0
      %p55 = por %p53, %p54
      %p56 = scmp.ne.s32.totalorder %s42, %s43
      %p57 = scmp.eq.s32.totalorder %s35, 1
      %p58 = por %p56, %p57
      %p60 = scmp.ne.s32.totalorder %s43, %s59
      %p61 = scmp.eq.s32.totalorder %s35, 0
      %p62 = por %p60, %p61
      %s64 = sadd.s32 %s63, 1
      %p67 = scmp.eq.s32.totalorder %s29, 1
      %p68 = scmp.ne.s32.totalorder %s63, %s65
      %p69 = scmp.eq.s32.totalorder %s29, 0
      %p70 = por %p68, %p69
      %p71 = scmp.ne.s32.totalorder %s63, %s65
      %p72 = scmp.eq.s32.totalorder %s34, 1
      %p73 = por %p71, %p72
      %p74 = scmp.ne.s32.totalorder %s65, %s66
      %p75 = scmp.eq.s32.totalorder %s34, 0
      %p76 = por %p74, %p75
      %p77 = scmp.ne.s32.totalorder %s65, %s66
      %p78 = scmp.eq.s32.totalorder %s35, 1
      %p79 = por %p77, %p78
      %p81 = scmp.ne.s32.totalorder %s66, %s80
      %p82 = scmp.eq.s32.totalorder %s35, 0
      %p83 = por %p81, %p82
      %s85 = sadd.s32 %s84, 1
      %p88 = scmp.eq.s32.totalorder %s29, 1
      %p89 = scmp.ne.s32.totalorder %s84, %s86
      %p90 = scmp.eq.s32.totalorder %s29, 0
      %p91 = por %p89, %p90
      %p92 = scmp.ne.s32.totalorder %s84, %s86
      %p93 = scmp.eq.s32.totalorder %s34, 1
      %p94 = por %p92, %p93
      %p95 = scmp.ne.s32.totalorder %s86, %s87
      %p96 = scmp.eq.s32.totalorder %s34, 0
      %p97 = por %p95, %p96
      %p98 = scmp.ne.s32.totalorder %s86, %s87
      %p99 = scmp.eq.s32.totalorder %s35, 1
      %p100 = por %p98, %p99
      %p102 = scmp.ne.s32.totalorder %s87, %s101
      %p103 = scmp.eq.s32.totalorder %s35, 0
      %p104 = por %p102, %p103
      %s106 = sadd.s32 %s105, 1
      %p109 = scmp.eq.s32.totalorder %s29, 1
      %p110 = scmp.ne.s32.totalorder %s105, %s107
      %p111 = scmp.eq.s32.totalorder %s29, 0
      %p112 = por %p110, %p111
      %p113 = scmp.ne.s32.totalorder %s105, %s107
      %p114 = scmp.eq.s32.totalorder %s34, 1
      %p115 = por %p113, %p114
      %p116 = scmp.ne.s32.totalorder %s107, %s108
      %p117 = scmp.eq.s32.totalorder %s34, 0
      %p118 = por %p116, %p117
      %p119 = scmp.ne.s32.totalorder %s107, %s108
      %p120 = scmp.eq.s32.totalorder %s35, 1
      %p121 = por %p119, %p120
      %p123 = scmp.ne.s32.totalorder %s108, %s122
      %p124 = scmp.eq.s32.totalorder %s35, 0
      %p125 = por %p123, %p124
      %s127 = sadd.s32 %s126, 1
      %p130 = scmp.eq.s32.totalorder %s29, 1
      %p131 = scmp.ne.s32.totalorder %s126, %s128
      %p132 = scmp.eq.s32.totalorder %s29, 0
      %p133 = por %p131, %p132
      %p134 = scmp.ne.s32.totalorder %s126, %s128
      %p135 = scmp.eq.s32.totalorder %s34, 1
      %p136 = por %p134, %p135
      %p137 = scmp.ne.s32.totalorder %s128, %s129
      %p138 = scmp.eq.s32.totalorder %s34, 0
      %p139 = por %p137, %p138
      %p140 = scmp.ne.s32.totalorder %s128, %s129
      %p141 = scmp.eq.s32.totalorder %s35, 1
      %p142 = por %p140, %p141
      %p144 = scmp.ne.s32.totalorder %s129, %s143
      %p145 = scmp.eq.s32.totalorder %s35, 0
      %p146 = por %p144, %p145
      %s148 = sadd.s32 %s147, 1
      %p151 = scmp.eq.s32.totalorder %s29, 1
      %p152 = scmp.ne.s32.totalorder %s147, %s149
      %p153 = scmp.eq.s32.totalorder %s29, 0
      %p154 = por %p152, %p153
      %p155 = scmp.ne.s32.totalorder %s147, %s149
      %p156 = scmp.eq.s32.totalorder %s34, 1
      %p157 = por %p155, %p156
      %p158 = scmp.ne.s32.totalorder %s149, %s150
      %p159 = scmp.eq.s32.totalorder %s34, 0
      %p160 = por %p158, %p159
      %p161 = scmp.ne.s32.totalorder %s149, %s150
      %p162 = scmp.eq.s32.totalorder %s35, 1
      %p163 = por %p161, %p162
      %p165 = scmp.ne.s32.totalorder %s150, %s164
      %p166 = scmp.eq.s32.totalorder %s35, 0
      %p167 = por %p165, %p166
      %s169 = sadd.s32 %s168, 1
      %p172 = scmp.eq.s32.totalorder %s29, 1
      %p173 = scmp.ne.s32.totalorder %s168, %s170
      %p174 = scmp.eq.s32.totalorder %s29, 0
      %p175 = por %p173, %p174
      %p176 = scmp.ne.s32.totalorder %s168, %s170
      %p177 = scmp.eq.s32.totalorder %s34, 1
      %p178 = por %p176, %p177
      %p179 = scmp.ne.s32.totalorder %s170, %s171
      %p180 = scmp.eq.s32.totalorder %s34, 0
      %p181 = por %p179, %p180
      %p182 = scmp.ne.s32.totalorder %s170, %s171
      %p183 = scmp.eq.s32.totalorder %s35, 1
      %p184 = por %p182, %p183
      %p186 = scmp.ne.s32.totalorder %s171, %s185
      %p187 = scmp.eq.s32.totalorder %s35, 0
      %p188 = por %p186, %p187
      %s190 = sadd.s32 %s189, 1
      %p193 = scmp.eq.s32.totalorder %s29, 1
      %p194 = scmp.ne.s32.totalorder %s189, %s191
      %p195 = scmp.eq.s32.totalorder %s29, 0
      %p196 = por %p194, %p195
      %p197 = scmp.ne.s32.totalorder %s189, %s191
      %p198 = scmp.eq.s32.totalorder %s34, 1
      %p199 = por %p197, %p198
      %p200 = scmp.ne.s32.totalorder %s191, %s192
      %p201 = scmp.eq.s32.totalorder %s34, 0
      %p202 = por %p200, %p201
      %p203 = scmp.ne.s32.totalorder %s191, %s192
      %p204 = scmp.eq.s32.totalorder %s35, 1
      %p205 = por %p203, %p204
      %p207 = scmp.ne.s32.totalorder %s192, %s206
      %p208 = scmp.eq.s32.totalorder %s35, 0
      %p209 = por %p207, %p208
      %s211 = sadd.s32 %s210, 1
      %p214 = scmp.eq.s32.totalorder %s29, 1
      %p215 = scmp.ne.s32.totalorder %s210, %s212
      %p216 = scmp.eq.s32.totalorder %s29, 0
      %p217 = por %p215, %p216
      %p218 = scmp.ne.s32.totalorder %s210, %s212
      %p219 = scmp.eq.s32.totalorder %s34, 1
      %p220 = por %p218, %p219
      %p221 = scmp.ne.s32.totalorder %s212, %s213
      %p222 = scmp.eq.s32.totalorder %s34, 0
      %p223 = por %p221, %p222
      %p224 = scmp.ne.s32.totalorder %s212, %s213
      %p225 = scmp.eq.s32.totalorder %s35, 1
      %p226 = por %p224, %p225
      %p228 = scmp.ne.s32.totalorder %s213, %s227
      %p229 = scmp.eq.s32.totalorder %s35, 0
      %p230 = por %p228, %p229
      %s232 = sadd.s32 %s231, 1
      %p235 = scmp.eq.s32.totalorder %s29, 1
      %p236 = scmp.ne.s32.totalorder %s231, %s233
      %p237 = scmp.eq.s32.totalorder %s29, 0
      %p238 = por %p236, %p237
      %p239 = scmp.ne.s32.totalorder %s231, %s233
      %p240 = scmp.eq.s32.totalorder %s34, 1
      %p241 = por %p239, %p240
      %p242 = scmp.ne.s32.totalorder %s233, %s234
      %p243 = scmp.eq.s32.totalorder %s34, 0
      %p244 = por %p242, %p243
      %p245 = scmp.ne.s32.totalorder %s233, %s234
      %p246 = scmp.eq.s32.totalorder %s35, 1
      %p247 = por %p245, %p246
      %p249 = scmp.ne.s32.totalorder %s234, %s248
      %p250 = scmp.eq.s32.totalorder %s35, 0
      %p251 = por %p249, %p250
      %s252 = ssub.s32 %s29, %s36
      %p253 = scmp.eq.s32.totalorder %s252, 0
      %s255 = sadd.s32 %s254, 1
      %s256 = scalar_select %p253, %s254, %s255
      %p259 = pneg %p253
      %p260 = scmp.eq.s32.totalorder %s29, 1
      %p261 = por %p259, %p260
      %p262 = scmp.ne.s32.totalorder %s254, %s257
      %p263 = scmp.eq.s32.totalorder %s29, 0
      %p264 = por %p262, %p263
      %p265 = scmp.ne.s32.totalorder %s254, %s257
      %p266 = scmp.eq.s32.totalorder %s34, 1
      %p267 = por %p265, %p266
      %p268 = scmp.ne.s32.totalorder %s257, %s258
      %p269 = scmp.eq.s32.totalorder %s34, 0
      %p270 = por %p268, %p269
      %p271 = scmp.ne.s32.totalorder %s257, %s258
      %p272 = scmp.eq.s32.totalorder %s35, 1
      %p273 = por %p271, %p272
      %p275 = scmp.ne.s32.totalorder %s258, %s274
      %p276 = scmp.eq.s32.totalorder %s35, 0
      %p277 = por %p275, %p276
      %s278 = ssub.s32 %s29, %s36
      %p279 = scmp.eq.s32.totalorder %s278, 0
      %s281 = sadd.s32 %s280, 1
      %s282 = scalar_select %p279, %s280, %s281
      %p285 = pneg %p279
      %p286 = scmp.eq.s32.totalorder %s29, 1
      %p287 = por %p285, %p286
      %p288 = scmp.ne.s32.totalorder %s280, %s283
      %p289 = scmp.eq.s32.totalorder %s29, 0
      %p290 = por %p288, %p289
      %p291 = scmp.ne.s32.totalorder %s280, %s283
      %p292 = scmp.eq.s32.totalorder %s34, 1
      %p293 = por %p291, %p292
      %p294 = scmp.ne.s32.totalorder %s283, %s284
      %p295 = scmp.eq.s32.totalorder %s34, 0
      %p296 = por %p294, %p295
      %p297 = scmp.ne.s32.totalorder %s283, %s284
      %p298 = scmp.eq.s32.totalorder %s35, 1
      %p299 = por %p297, %p298
      %p301 = scmp.ne.s32.totalorder %s284, %s300
      %p302 = scmp.eq.s32.totalorder %s35, 0
      %p303 = por %p301, %p302
      %p304 = scmp.le.s32.totalorder 1, %s29
      %p305 = scmp.lt.s32.totalorder %s29, 3
      %p306 = pnand %p304, %p305
      %p307 = pneg %p306
      // Predicated region
      $region9: #{tpu_custom_call.1} parent=5 // pred_check
        _
      $region10: #{tpu_custom_call.1} parent=5 // pred_check_branch
        %309 = sbr.rel (%p306) target = $region12
      $region11: #{tpu_custom_call.1} parent=5 // pred_region
        %s310 = ssub.s32 %s29, 1
        // Predicated region
        $region13: #{tpu_custom_call.1} parent=11 // pred_check
          %p311 = pneg %p76
        $region14: #{tpu_custom_call.1} parent=11 // pred_check_branch
          %313 = sbr.rel (%p311) target = $region16
        $region15: #{tpu_custom_call.1} parent=11 // pred_region
          %s315 = ssub.s32 6144, 6144
          %316 = vsyncadd [#allocation6], %s315
          %s317 = sshll.u32 [#allocation5], 4
          %s318 = int_to_ptr.vmem [resolvable:$true] %s317
          %323 = dma.hbm_to_vmem [thread:$0]  %s1, 6144, %s318, [#allocation6], 384, 384, 24
        $region16: #{tpu_custom_call.1} parent=11 // pred_fallthru
          _
        // Predicated region
        $region17: #{tpu_custom_call.1} parent=11 // pred_check
          %p324 = pneg %p97
        $region18: #{tpu_custom_call.1} parent=11 // pred_check_branch
          %326 = sbr.rel (%p324) target = $region20
        $region19: #{tpu_custom_call.1} parent=11 // pred_region
          _
        $region20: #{tpu_custom_call.1} parent=11 // pred_fallthru
          _
        // Predicated region
        $region21: #{tpu_custom_call.1} parent=11 // pred_check
          %p327 = pneg %p118
        $region22: #{tpu_custom_call.1} parent=11 // pred_check_branch
          %329 = sbr.rel (%p327) target = $region24
        $region23: #{tpu_custom_call.1} parent=11 // pred_region
          %s331 = ssub.s32 2048, 2048
          %332 = vsyncadd [#allocation6], %s331
          %s333 = sshll.u32 [#allocation7], 4
          %s334 = int_to_ptr.vmem [resolvable:$true] %s333
          %339 = dma.hbm_to_vmem [thread:$0]  %s3, 2048, %s334, [#allocation6], 128, 128, 8
        $region24: #{tpu_custom_call.1} parent=11 // pred_fallthru
          _
        // Predicated region
        $region25: #{tpu_custom_call.1} parent=11 // pred_check
          %p340 = pneg %p139
        $region26: #{tpu_custom_call.1} parent=11 // pred_check_branch
          %342 = sbr.rel (%p340) target = $region28
        $region27: #{tpu_custom_call.1} parent=11 // pred_region
          _
        $region28: #{tpu_custom_call.1} parent=11 // pred_fallthru
          _
        // Predicated region
        $region29: #{tpu_custom_call.1} parent=11 // pred_check
          %p343 = pneg %p160
        $region30: #{tpu_custom_call.1} parent=11 // pred_check_branch
          %345 = sbr.rel (%p343) target = $region32
        $region31: #{tpu_custom_call.1} parent=11 // pred_region
          %s347 = ssub.s32 4096, 4096
          %348 = vsyncadd [#allocation9], %s347
          %s349 = sshll.u32 [#allocation8], 4
          %s350 = int_to_ptr.vmem [resolvable:$true] %s349
          %355 = dma.hbm_to_vmem [thread:$0]  %s5, 4096, %s350, [#allocation9], 256, 256, 16
        $region32: #{tpu_custom_call.1} parent=11 // pred_fallthru
          _
        // Predicated region
        $region33: #{tpu_custom_call.1} parent=11 // pred_check
          %p356 = pneg %p181
        $region34: #{tpu_custom_call.1} parent=11 // pred_check_branch
          %358 = sbr.rel (%p356) target = $region36
        $region35: #{tpu_custom_call.1} parent=11 // pred_region
          _
        $region36: #{tpu_custom_call.1} parent=11 // pred_fallthru
          _
        // Predicated region
        $region37: #{tpu_custom_call.1} parent=11 // pred_check
          %p359 = pneg %p202
        $region38: #{tpu_custom_call.1} parent=11 // pred_check_branch
          %361 = sbr.rel (%p359) target = $region40
        $region39: #{tpu_custom_call.1} parent=11 // pred_region
          %s363 = ssub.s32 4096, 4096
          %364 = vsyncadd [#allocation9], %s363
          %s365 = sshll.u32 [#allocation10], 4
          %s366 = int_to_ptr.vmem [resolvable:$true] %s365
          %371 = dma.hbm_to_vmem [thread:$0]  %s7, 4096, %s366, [#allocation9], 128, 128, 8
        $region40: #{tpu_custom_call.1} parent=11 // pred_fallthru
          _
        // Predicated region
        $region41: #{tpu_custom_call.1} parent=11 // pred_check
          %p372 = pneg %p223
        $region42: #{tpu_custom_call.1} parent=11 // pred_check_branch
          %374 = sbr.rel (%p372) target = $region44
        $region43: #{tpu_custom_call.1} parent=11 // pred_region
          _
        $region44: #{tpu_custom_call.1} parent=11 // pred_fallthru
          _
        // Predicated region
        $region45: #{tpu_custom_call.1} parent=11 // pred_check
          %p375 = pneg %p244
        $region46: #{tpu_custom_call.1} parent=11 // pred_check_branch
          %377 = sbr.rel (%p375) target = $region48
        $region47: #{tpu_custom_call.1} parent=11 // pred_region
          _
        $region48: #{tpu_custom_call.1} parent=11 // pred_fallthru
          _
      $region12: #{tpu_custom_call.1} parent=5 // pred_fallthru
        _
      %p378 = scmp.lt.s32.totalorder %s29, 2
      // Predicated region
      $region49: #{tpu_custom_call.1} parent=5 // pred_check
        %p379 = pneg %p378
      $region50: #{tpu_custom_call.1} parent=5 // pred_check_branch
        %381 = sbr.rel (%p379) target = $region52
      $region51: #{tpu_custom_call.1} parent=5 // pred_region
        // Predicated region
        $region53: #{tpu_custom_call.1} parent=51 // pred_check
          %p382 = pneg %p49
        $region54: #{tpu_custom_call.1} parent=51 // pred_check_branch
          %384 = sbr.rel (%p382) target = $region56
        $region55: #{tpu_custom_call.1} parent=51 // pred_region
          %s385 = sand.u32 %s39, 1
          %s386 = scalar_lea.sflag [#allocation3], %s385
          %s387 = sand.u32 %s39, 1
          %s388 = smul.addr %s387, 8
          %s389 = scalar_lea.vmem [#allocation2], %s388
          %s391 = ssub.s32 128, 128
          %392 = vsyncadd %s386, %s391
          %s393 = smul.addr %s29, 128
          %s394 = scalar_lea.hbm %s0, %s393
          %s396 = sshll.u32 %s389, 4
          %s397 = int_to_ptr.vmem [resolvable:$true] %s396
          %399 = dma.hbm_to_vmem [thread:$0]  %s394, 128, %s397, %s386
        $region56: #{tpu_custom_call.1} parent=51 // pred_fallthru
          _
      $region52: #{tpu_custom_call.1} parent=5 // pred_fallthru
        _
      %p400 = scmp.le.s32.totalorder 1, %s29
      %p401 = scmp.lt.s32.totalorder %s29, 3
      %p402 = pnand %p400, %p401
      %p403 = pneg %p402
      // Predicated region
      $region57: #{tpu_custom_call.1} parent=5 // pred_check
        _
      $region58: #{tpu_custom_call.1} parent=5 // pred_check_branch
        %405 = sbr.rel (%p402) target = $region60
      $region59: #{tpu_custom_call.1} parent=5 // pred_region
        %s406 = ssub.s32 %s29, 1
        %s407 = sand.u32 %s42, 1
        %s408 = scalar_lea.sflag [#allocation3], %s407
        %s409 = sand.u32 %s42, 1
        %s410 = smul.addr %s409, 8
        %s411 = scalar_lea.vmem [#allocation2], %s410
        // Predicated region
        $region61: #{tpu_custom_call.1} parent=59 // pred_check
          %p412 = pneg %p55
        $region62: #{tpu_custom_call.1} parent=59 // pred_check_branch
          %414 = sbr.rel (%p412) target = $region64
        $region63: #{tpu_custom_call.1} parent=59 // pred_region
          %415 = dma.done %s408, 128
        $region64: #{tpu_custom_call.1} parent=59 // pred_fallthru
          _
        // Predicated region
        $region65: #{tpu_custom_call.1} parent=59 // pred_check
          %p416 = pneg %p76
        $region66: #{tpu_custom_call.1} parent=59 // pred_check_branch
          %418 = sbr.rel (%p416) target = $region68
        $region67: #{tpu_custom_call.1} parent=59 // pred_region
          %419 = dma.done [#allocation6], 6144
        $region68: #{tpu_custom_call.1} parent=59 // pred_fallthru
          _
        // Predicated region
        $region69: #{tpu_custom_call.1} parent=59 // pred_check
          %p420 = pneg %p118
        $region70: #{tpu_custom_call.1} parent=59 // pred_check_branch
          %422 = sbr.rel (%p420) target = $region72
        $region71: #{tpu_custom_call.1} parent=59 // pred_region
          %423 = dma.done [#allocation6], 2048
        $region72: #{tpu_custom_call.1} parent=59 // pred_fallthru
          _
        // Predicated region
        $region73: #{tpu_custom_call.1} parent=59 // pred_check
          %p424 = pneg %p160
        $region74: #{tpu_custom_call.1} parent=59 // pred_check_branch
          %426 = sbr.rel (%p424) target = $region76
        $region75: #{tpu_custom_call.1} parent=59 // pred_region
          %427 = dma.done [#allocation9], 4096
        $region76: #{tpu_custom_call.1} parent=59 // pred_fallthru
          _
        // Predicated region
        $region77: #{tpu_custom_call.1} parent=59 // pred_check
          %p428 = pneg %p202
        $region78: #{tpu_custom_call.1} parent=59 // pred_check_branch
          %430 = sbr.rel (%p428) target = $region80
        $region79: #{tpu_custom_call.1} parent=59 // pred_region
          %431 = dma.done [#allocation9], 4096
        $region80: #{tpu_custom_call.1} parent=59 // pred_fallthru
          _
        %s432 = sand.u32 %s42, 1
        %s433 = scalar_lea.sflag [#allocation3], %s432
        %s434 = sand.u32 %s42, 1
        %s435 = smul.addr %s434, 8
        %s436 = scalar_lea.vmem [#allocation2], %s435
        %p437 = pneg %p55
        %p438 = pneg %p52
        %p439 = pneg %p76
        %p440 = pneg %p73
        %p441 = pneg %p97
        %p442 = pneg %p94
        %p443 = pneg %p118
        %p444 = pneg %p115
        %p445 = pneg %p139
        %p446 = pneg %p136
        %p447 = pneg %p160
        %p448 = pneg %p157
        %p449 = pneg %p181
        %p450 = pneg %p178
        %p451 = pneg %p202
        %p452 = pneg %p199
        %p453 = pneg %p223
        %p454 = pneg %p220
        %p455 = pneg %p244
        %p456 = pneg %p241
        %p457 = pneg %p270
        %p458 = pneg %p267
        %s459 = sand.u32 %s257, 1
        %s460 = scalar_lea.sflag [#allocation4], %s459
        %s461 = sand.u32 %s257, 1
        %s462 = smul.addr %s461, 8
        %s463 = scalar_lea.vmem [#allocation11], %s462
        %p464 = pneg %p296
        %p465 = pneg %p293
        %s466 = sand.u32 %s283, 1
        %s467 = scalar_lea.sflag [#allocation13], %s466
        %s468 = sand.u32 %s283, 1
        %s469 = smul.addr %s468, 8
        %s470 = scalar_lea.vmem [#allocation12], %s469
        %v471 = vld [vmem:[%s411] sm:$0xff]
        %v472 = vld [vmem:[#allocation5] sm:$0xff]
        %v473 = vld [vmem:[#allocation5 + $0x8] sm:$0xff]
        %v474 = vld [vmem:[#allocation5 + $0x10] sm:$0xff]
        %v475 = vld [vmem:[#allocation5 + $0x18] sm:$0xff]
        %v476 = vld [vmem:[#allocation5 + $0x20] sm:$0xff]
        %v477 = vld [vmem:[#allocation5 + $0x28] sm:$0xff]
        %v478 = vld [vmem:[#allocation5 + $0x30] sm:$0xff]
        %v479 = vld [vmem:[#allocation5 + $0x38] sm:$0xff]
        %v480 = vld [vmem:[#allocation5 + $0x40] sm:$0xff]
        %v481 = vld [vmem:[#allocation5 + $0x48] sm:$0xff]
        %v482 = vld [vmem:[#allocation5 + $0x50] sm:$0xff]
        %v483 = vld [vmem:[#allocation5 + $0x58] sm:$0xff]
        %v484 = vld [vmem:[#allocation5 + $0x60] sm:$0xff]
        %v485 = vld [vmem:[#allocation5 + $0x68] sm:$0xff]
        %v486 = vld [vmem:[#allocation5 + $0x70] sm:$0xff]
        %v487 = vld [vmem:[#allocation5 + $0x78] sm:$0xff]
        %v488 = vld [vmem:[#allocation5 + $0x80] sm:$0xff]
        %v489 = vld [vmem:[#allocation5 + $0x88] sm:$0xff]
        %v490 = vld [vmem:[#allocation5 + $0x90] sm:$0xff]
        %v491 = vld [vmem:[#allocation5 + $0x98] sm:$0xff]
        %v492 = vld [vmem:[#allocation5 + $0xa0] sm:$0xff]
        %v493 = vld [vmem:[#allocation5 + $0xa8] sm:$0xff]
        %v494 = vld [vmem:[#allocation5 + $0xb0] sm:$0xff]
        %v495 = vld [vmem:[#allocation5 + $0xb8] sm:$0xff]
        %v496 = vld [vmem:[#allocation5 + $0xc0] sm:$0xff]
        %v497 = vld [vmem:[#allocation5 + $0xc8] sm:$0xff]
        %v498 = vld [vmem:[#allocation5 + $0xd0] sm:$0xff]
        %v499 = vld [vmem:[#allocation5 + $0xd8] sm:$0xff]
        %v500 = vld [vmem:[#allocation5 + $0xe0] sm:$0xff]
        %v501 = vld [vmem:[#allocation5 + $0xe8] sm:$0xff]
        %v502 = vld [vmem:[#allocation5 + $0xf0] sm:$0xff]
        %v503 = vld [vmem:[#allocation5 + $0xf8] sm:$0xff]
        %v504 = vld [vmem:[#allocation5 + $0x100] sm:$0xff]
        %v505 = vld [vmem:[#allocation5 + $0x108] sm:$0xff]
        %v506 = vld [vmem:[#allocation5 + $0x110] sm:$0xff]
        %v507 = vld [vmem:[#allocation5 + $0x118] sm:$0xff]
        %v508 = vld [vmem:[#allocation5 + $0x120] sm:$0xff]
        %v509 = vld [vmem:[#allocation5 + $0x128] sm:$0xff]
        %v510 = vld [vmem:[#allocation5 + $0x130] sm:$0xff]
        %v511 = vld [vmem:[#allocation5 + $0x138] sm:$0xff]
        %v512 = vld [vmem:[#allocation5 + $0x140] sm:$0xff]
        %v513 = vld [vmem:[#allocation5 + $0x148] sm:$0xff]
        %v514 = vld [vmem:[#allocation5 + $0x150] sm:$0xff]
        %v515 = vld [vmem:[#allocation5 + $0x158] sm:$0xff]
        %v516 = vld [vmem:[#allocation5 + $0x160] sm:$0xff]
        %v517 = vld [vmem:[#allocation5 + $0x168] sm:$0xff]
        %v518 = vld [vmem:[#allocation5 + $0x170] sm:$0xff]
        %v519 = vld [vmem:[#allocation5 + $0x178] sm:$0xff]
        %v520 = vld [vmem:[%s2] sm:$0x7]
        %v522 = vlaneseq
        %v523 = vshrl.u32 %v522, 7
        %v524 = vsub.s32 0, %v523
        %v525 = vrot.slane %v520, %v524
        %v526 = vlaneseq
        %v527 = vshrl.u32 %v526, 7
        %v528 = vsub.s32 1, %v527
        %v529 = vrot.slane %v520, %v528
        %v530 = vlaneseq
        %v531 = vshrl.u32 %v530, 7
        %v532 = vsub.s32 2, %v531
        %v533 = vrot.slane %v520, %v532
        %537 = vmatprep.subr.mxu0 %v473
        %538 = vmatpush1.msra.mxu0 %v472
        %539 = vmatprep.subr.mxu0 %v476
        %540 = vmatpush1.msra.mxu0 %v475
        %541 = vmatprep.subr.mxu0 %v479
        %542 = vmatpush1.msra.mxu0 %v478
        %543 = vmatprep.subr.mxu0 %v482
        %544 = vmatpush1.msra.mxu0 %v481
        %545 = vmatprep.subr.mxu0 %v485
        %546 = vmatpush1.msra.mxu0 %v484
        %547 = vmatprep.subr.mxu0 %v488
        %548 = vmatpush1.msra.mxu0 %v487
        %549 = vmatprep.subr.mxu0 %v491
        %550 = vmatpush1.msra.mxu0 %v490
        %551 = vmatprep.subr.mxu0 %v494
        %552 = vmatpush1.msra.mxu0 %v493
        %553 = vmatprep.subr.mxu0 %v497
        %554 = vmatpush1.msra.mxu0 %v496
        %555 = vmatprep.subr.mxu0 %v500
        %556 = vmatpush1.msra.mxu0 %v499
        %557 = vmatprep.subr.mxu0 %v503
        %558 = vmatpush1.msra.mxu0 %v502
        %559 = vmatprep.subr.mxu0 %v506
        %560 = vmatpush1.msra.mxu0 %v505
        %561 = vmatprep.subr.mxu0 %v509
        %562 = vmatpush1.msra.mxu0 %v508
        %563 = vmatprep.subr.mxu0 %v512
        %564 = vmatpush1.msra.mxu0 %v511
        %565 = vmatprep.subr.mxu0 %v515
        %566 = vmatpush1.msra.mxu0 %v514
        %567 = vmatprep.subr.mxu0 %v518
        %568 = vmatpush1.msra.mxu0 %v517
        %569 = vmatprep.subr.mxu0 0.0
        %570 = vmatpush1.msra.mxu0 0.0
        %571 = vmatprep.subr.mxu0 0.0
        %572 = vmatpush1.msra.mxu0 0.0
        %573 = vmatprep.subr.mxu0 0.0
        %574 = vmatpush1.msra.mxu0 0.0
        %575 = vmatprep.subr.mxu0 0.0
        %576 = vmatpush1.msra.mxu0 0.0
        %577 = vmatprep.subr.mxu0 0.0
        %578 = vmatpush1.msra.mxu0 0.0
        %579 = vmatprep.subr.mxu0 0.0
        %580 = vmatpush1.msra.mxu0 0.0
        %581 = vmatprep.subr.mxu0 0.0
        %582 = vmatpush1.msra.mxu0 0.0
        %583 = vmatprep.subr.mxu0 0.0
        %584 = vmatpush1.msra.mxu0 0.0
        %585 = vmatprep.subr.mxu0 0.0
        %586 = vmatpush1.msra.mxu0 0.0
        %587 = vmatprep.subr.mxu0 0.0
        %588 = vmatpush1.msra.mxu0 0.0
        %589 = vmatprep.subr.mxu0 0.0
        %590 = vmatpush1.msra.mxu0 0.0
        %591 = vmatprep.subr.mxu0 0.0
        %592 = vmatpush1.msra.mxu0 0.0
        %593 = vmatprep.subr.mxu0 0.0
        %594 = vmatpush1.msra.mxu0 0.0
        %595 = vmatprep.subr.mxu0 0.0
        %596 = vmatpush1.msra.mxu0 0.0
        %597 = vmatprep.subr.mxu0 0.0
        %598 = vmatpush1.msra.mxu0 0.0
        %599 = vmatprep.subr.mxu0 0.0
        %600 = vmatpush1.msra.mxu0 0.0
        %601 = vmatprep.mubr.f32.mxu0 0.0
        %602 = vmatmul.mubr.f32.gmra.mrb[0].mxu0 %v471
        %v603 = vpop.f32.mrb[0].mxu0
        %v604 = vadd.f32 %v525, %v603
        %v605 = vpop.f32.mrb[0].mxu0
        %v606 = vadd.f32 %v529, %v605
        %607 = vdwg.mxu0
        %608 = vmatprep.subr.mxu0 0.0
        %609 = vmatpush1.msra.mxu0 %v474
        %610 = vmatprep.subr.mxu0 0.0
        %611 = vmatpush1.msra.mxu0 %v477
        %612 = vmatprep.subr.mxu0 0.0
        %613 = vmatpush1.msra.mxu0 %v480
        %614 = vmatprep.subr.mxu0 0.0
        %615 = vmatpush1.msra.mxu0 %v483
        %616 = vmatprep.subr.mxu0 0.0
        %617 = vmatpush1.msra.mxu0 %v486
        %618 = vmatprep.subr.mxu0 0.0
        %619 = vmatpush1.msra.mxu0 %v489
        %620 = vmatprep.subr.mxu0 0.0
        %621 = vmatpush1.msra.mxu0 %v492
        %622 = vmatprep.subr.mxu0 0.0
        %623 = vmatpush1.msra.mxu0 %v495
        %624 = vmatprep.subr.mxu0 0.0
        %625 = vmatpush1.msra.mxu0 %v498
        %626 = vmatprep.subr.mxu0 0.0
        %627 = vmatpush1.msra.mxu0 %v501
        %628 = vmatprep.subr.mxu0 0.0
        %629 = vmatpush1.msra.mxu0 %v504
        %630 = vmatprep.subr.mxu0 0.0
        %631 = vmatpush1.msra.mxu0 %v507
        %632 = vmatprep.subr.mxu0 0.0
        %633 = vmatpush1.msra.mxu0 %v510
        %634 = vmatprep.subr.mxu0 0.0
        %635 = vmatpush1.msra.mxu0 %v513
        %636 = vmatprep.subr.mxu0 0.0
        %637 = vmatpush1.msra.mxu0 %v516
        %638 = vmatprep.subr.mxu0 0.0
        %639 = vmatpush1.msra.mxu0 %v519
        %640 = vmatprep.subr.mxu0 0.0
        %641 = vmatpush1.msra.mxu0 0.0
        %642 = vmatprep.subr.mxu0 0.0
        %643 = vmatpush1.msra.mxu0 0.0
        %644 = vmatprep.subr.mxu0 0.0
        %645 = vmatpush1.msra.mxu0 0.0
        %646 = vmatprep.subr.mxu0 0.0
        %647 = vmatpush1.msra.mxu0 0.0
        %648 = vmatprep.subr.mxu0 0.0
        %649 = vmatpush1.msra.mxu0 0.0
        %650 = vmatprep.subr.mxu0 0.0
        %651 = vmatpush1.msra.mxu0 0.0
        %652 = vmatprep.subr.mxu0 0.0
        %653 = vmatpush1.msra.mxu0 0.0
        %654 = vmatprep.subr.mxu0 0.0
        %655 = vmatpush1.msra.mxu0 0.0
        %656 = vmatprep.subr.mxu0 0.0
        %657 = vmatpush1.msra.mxu0 0.0
        %658 = vmatprep.subr.mxu0 0.0
        %659 = vmatpush1.msra.mxu0 0.0
        %660 = vmatprep.subr.mxu0 0.0
        %661 = vmatpush1.msra.mxu0 0.0
        %662 = vmatprep.subr.mxu0 0.0
        %663 = vmatpush1.msra.mxu0 0.0
        %664 = vmatprep.subr.mxu0 0.0
        %665 = vmatpush1.msra.mxu0 0.0
        %666 = vmatprep.subr.mxu0 0.0
        %667 = vmatpush1.msra.mxu0 0.0
        %668 = vmatprep.subr.mxu0 0.0
        %669 = vmatpush1.msra.mxu0 0.0
        %670 = vmatprep.subr.mxu0 0.0
        %671 = vmatpush1.msra.mxu0 0.0
        %672 = vmatprep.mubr.f32.mxu0 0.0
        %673 = vmatmul.mubr.f32.gmra.mrb[0].mxu0 %v471
        %v674 = vpop.f32.mrb[0].mxu0
        %v675 = vadd.f32 %v533, %v674
        %v676 = vpop.f32.mrb[0].mxu0
        %677 = vdwg.mxu0
        %v678 = vmul.f32 %v604, 0.25
        %vm679 = vcmask 130048
        %v681 = vsel %vm679, %v678, 0
        %v684 = vsel %vm679, %v606, 0
        %686 = vmatprep.subr.mxu0 0.0
        %687 = vmatpush1.xpose.msra.mxu0 %v684
        %688 = vmatprep.subr.mxu0 0.0
        %689 = vmatpush1.xpose.msra.mxu0 0.0
        %690 = vmatprep.subr.mxu0 0.0
        %691 = vmatpush1.xpose.msra.mxu0 0.0
        %692 = vmatprep.subr.mxu0 0.0
        %693 = vmatpush1.xpose.msra.mxu0 0.0
        %694 = vmatprep.subr.mxu0 0.0
        %695 = vmatpush1.xpose.msra.mxu0 0.0
        %696 = vmatprep.subr.mxu0 0.0
        %697 = vmatpush1.xpose.msra.mxu0 0.0
        %698 = vmatprep.subr.mxu0 0.0
        %699 = vmatpush1.xpose.msra.mxu0 0.0
        %700 = vmatprep.subr.mxu0 0.0
        %701 = vmatpush1.xpose.msra.mxu0 0.0
        %702 = vmatprep.subr.mxu0 0.0
        %703 = vmatpush1.xpose.msra.mxu0 0.0
        %704 = vmatprep.subr.mxu0 0.0
        %705 = vmatpush1.xpose.msra.mxu0 0.0
        %706 = vmatprep.subr.mxu0 0.0
        %707 = vmatpush1.xpose.msra.mxu0 0.0
        %708 = vmatprep.subr.mxu0 0.0
        %709 = vmatpush1.xpose.msra.mxu0 0.0
        %710 = vmatprep.subr.mxu0 0.0
        %711 = vmatpush1.xpose.msra.mxu0 0.0
        %712 = vmatprep.subr.mxu0 0.0
        %713 = vmatpush1.xpose.msra.mxu0 0.0
        %714 = vmatprep.subr.mxu0 0.0
        %715 = vmatpush1.xpose.msra.mxu0 0.0
        %716 = vmatprep.subr.mxu0 0.0
        %717 = vmatpush1.xpose.msra.mxu0 0.0
        %718 = vmatprep.subr.mxu0 0.0
        %719 = vmatpush1.xpose.msra.mxu0 0.0
        %720 = vmatprep.subr.mxu0 0.0
        %721 = vmatpush1.xpose.msra.mxu0 0.0
        %722 = vmatprep.subr.mxu0 0.0
        %723 = vmatpush1.xpose.msra.mxu0 0.0
        %724 = vmatprep.subr.mxu0 0.0
        %725 = vmatpush1.xpose.msra.mxu0 0.0
        %726 = vmatprep.subr.mxu0 0.0
        %727 = vmatpush1.xpose.msra.mxu0 0.0
        %728 = vmatprep.subr.mxu0 0.0
        %729 = vmatpush1.xpose.msra.mxu0 0.0
        %730 = vmatprep.subr.mxu0 0.0
        %731 = vmatpush1.xpose.msra.mxu0 0.0
        %732 = vmatprep.subr.mxu0 0.0
        %733 = vmatpush1.xpose.msra.mxu0 0.0
        %734 = vmatprep.subr.mxu0 0.0
        %735 = vmatpush1.xpose.msra.mxu0 0.0
        %736 = vmatprep.subr.mxu0 0.0
        %737 = vmatpush1.xpose.msra.mxu0 0.0
        %738 = vmatprep.subr.mxu0 0.0
        %739 = vmatpush1.xpose.msra.mxu0 0.0
        %740 = vmatprep.subr.mxu0 0.0
        %741 = vmatpush1.xpose.msra.mxu0 0.0
        %742 = vmatprep.subr.mxu0 0.0
        %743 = vmatpush1.xpose.msra.mxu0 0.0
        %744 = vmatprep.subr.mxu0 0.0
        %745 = vmatpush1.xpose.msra.mxu0 0.0
        %746 = vmatprep.subr.mxu0 0.0
        %747 = vmatpush1.xpose.msra.mxu0 0.0
        %748 = vmatprep.subr.mxu0 0.0
        %749 = vmatpush1.xpose.msra.mxu0 0.0
        %750 = vmatprep.mubr.f32.mxu0 0.0
        %751 = vmatmul.mubr.f32.gmra.mrb[0].mxu0 %v681
        %v752 = vpop.f32.mrb[0].mxu0
        %v753 = vadd.f32 0.0, %v752
        %v754 = vpop.f32.mrb[0].mxu0
        %755 = vdwg.mxu0
        %vm756 = vcmask 64512
        %v757 = vsel %vm756, %v753, -inf
        %758 = vmax.xlane.f32.xlu0 %v757
        %v759 = vpop.xlane.xlu0 %758
        %v760 = vsub.f32 %v753, %v759
        %v761 = vmul.f32 %v760, 1.442695
        %v762 = vpow.pop %v761
        %v763 = vsel %vm756, %v762, 0.0
        %764 = vadd.xlane.f32.xlu0 %v763
        %v765 = vpop.xlane.xlu0 %764
        %v766 = vrcp.pop %v765
        %v767 = vmul.f32 %v762, %v766
        %v768 = vadd.f32 %v767, 0.0
        %v770 = vsel %vm756, %v767, 0
        %772 = vmatprep.subr.mxu0 0.0
        %773 = vmatpush1.msra.mxu0 %v675
        %774 = vmatprep.subr.mxu0 0.0
        %775 = vmatpush1.msra.mxu0 0.0
        %776 = vmatprep.subr.mxu0 0.0
        %777 = vmatpush1.msra.mxu0 0.0
        %778 = vmatprep.subr.mxu0 0.0
        %779 = vmatpush1.msra.mxu0 0.0
        %780 = vmatprep.subr.mxu0 0.0
        %781 = vmatpush1.msra.mxu0 0.0
        %782 = vmatprep.subr.mxu0 0.0
        %783 = vmatpush1.msra.mxu0 0.0
        %784 = vmatprep.subr.mxu0 0.0
        %785 = vmatpush1.msra.mxu0 0.0
        %786 = vmatprep.subr.mxu0 0.0
        %787 = vmatpush1.msra.mxu0 0.0
        %788 = vmatprep.subr.mxu0 0.0
        %789 = vmatpush1.msra.mxu0 0.0
        %790 = vmatprep.subr.mxu0 0.0
        %791 = vmatpush1.msra.mxu0 0.0
        %792 = vmatprep.subr.mxu0 0.0
        %793 = vmatpush1.msra.mxu0 0.0
        %794 = vmatprep.subr.mxu0 0.0
        %795 = vmatpush1.msra.mxu0 0.0
        %796 = vmatprep.subr.mxu0 0.0
        %797 = vmatpush1.msra.mxu0 0.0
        %798 = vmatprep.subr.mxu0 0.0
        %799 = vmatpush1.msra.mxu0 0.0
        %800 = vmatprep.subr.mxu0 0.0
        %801 = vmatpush1.msra.mxu0 0.0
        %802 = vmatprep.subr.mxu0 0.0
        %803 = vmatpush1.msra.mxu0 0.0
        %804 = vmatprep.subr.mxu0 0.0
        %805 = vmatpush1.msra.mxu0 0.0
        %806 = vmatprep.subr.mxu0 0.0
        %807 = vmatpush1.msra.mxu0 0.0
        %808 = vmatprep.subr.mxu0 0.0
        %809 = vmatpush1.msra.mxu0 0.0
        %810 = vmatprep.subr.mxu0 0.0
        %811 = vmatpush1.msra.mxu0 0.0
        %812 = vmatprep.subr.mxu0 0.0
        %813 = vmatpush1.msra.mxu0 0.0
        %814 = vmatprep.subr.mxu0 0.0
        %815 = vmatpush1.msra.mxu0 0.0
        %816 = vmatprep.subr.mxu0 0.0
        %817 = vmatpush1.msra.mxu0 0.0
        %818 = vmatprep.subr.mxu0 0.0
        %819 = vmatpush1.msra.mxu0 0.0
        %820 = vmatprep.subr.mxu0 0.0
        %821 = vmatpush1.msra.mxu0 0.0
        %822 = vmatprep.subr.mxu0 0.0
        %823 = vmatpush1.msra.mxu0 0.0
        %824 = vmatprep.subr.mxu0 0.0
        %825 = vmatpush1.msra.mxu0 0.0
        %826 = vmatprep.subr.mxu0 0.0
        %827 = vmatpush1.msra.mxu0 0.0
        %828 = vmatprep.subr.mxu0 0.0
        %829 = vmatpush1.msra.mxu0 0.0
        %830 = vmatprep.subr.mxu0 0.0
        %831 = vmatpush1.msra.mxu0 0.0
        %832 = vmatprep.subr.mxu0 0.0
        %833 = vmatpush1.msra.mxu0 0.0
        %834 = vmatprep.subr.mxu0 0.0
        %835 = vmatpush1.msra.mxu0 0.0
        %836 = vmatprep.mubr.f32.mxu0 0.0
        %837 = vmatmul.mubr.f32.gmra.mrb[0].mxu0 %v770
        %v838 = vpop.f32.mrb[0].mxu0
        %v839 = vadd.f32 0.0, %v838
        %v840 = vpop.f32.mrb[0].mxu0
        %841 = vdwg.mxu0
        %842 = vrot.lane.b32.xlu0 %v678, 112
        %v843 = vpop.permute.xlu0 %842
        %844 = vrot.lane.b32.xlu0 %v606, 112
        %v845 = vpop.permute.xlu0 %844
        %v846 = vsel %vm679, %v843, 0
        %v848 = vsel %vm679, %v845, 0
        %850 = vmatprep.subr.mxu0 0.0
        %851 = vmatpush1.xpose.msra.mxu0 %v848
        %852 = vmatprep.subr.mxu0 0.0
        %853 = vmatpush1.xpose.msra.mxu0 0.0
        %854 = vmatprep.subr.mxu0 0.0
        %855 = vmatpush1.xpose.msra.mxu0 0.0
        %856 = vmatprep.subr.mxu0 0.0
        %857 = vmatpush1.xpose.msra.mxu0 0.0
        %858 = vmatprep.subr.mxu0 0.0
        %859 = vmatpush1.xpose.msra.mxu0 0.0
        %860 = vmatprep.subr.mxu0 0.0
        %861 = vmatpush1.xpose.msra.mxu0 0.0
        %862 = vmatprep.subr.mxu0 0.0
        %863 = vmatpush1.xpose.msra.mxu0 0.0
        %864 = vmatprep.subr.mxu0 0.0
        %865 = vmatpush1.xpose.msra.mxu0 0.0
        %866 = vmatprep.subr.mxu0 0.0
        %867 = vmatpush1.xpose.msra.mxu0 0.0
        %868 = vmatprep.subr.mxu0 0.0
        %869 = vmatpush1.xpose.msra.mxu0 0.0
        %870 = vmatprep.subr.mxu0 0.0
        %871 = vmatpush1.xpose.msra.mxu0 0.0
        %872 = vmatprep.subr.mxu0 0.0
        %873 = vmatpush1.xpose.msra.mxu0 0.0
        %874 = vmatprep.subr.mxu0 0.0
        %875 = vmatpush1.xpose.msra.mxu0 0.0
        %876 = vmatprep.subr.mxu0 0.0
        %877 = vmatpush1.xpose.msra.mxu0 0.0
        %878 = vmatprep.subr.mxu0 0.0
        %879 = vmatpush1.xpose.msra.mxu0 0.0
        %880 = vmatprep.subr.mxu0 0.0
        %881 = vmatpush1.xpose.msra.mxu0 0.0
        %882 = vmatprep.subr.mxu0 0.0
        %883 = vmatpush1.xpose.msra.mxu0 0.0
        %884 = vmatprep.subr.mxu0 0.0
        %885 = vmatpush1.xpose.msra.mxu0 0.0
        %886 = vmatprep.subr.mxu0 0.0
        %887 = vmatpush1.xpose.msra.mxu0 0.0
        %888 = vmatprep.subr.mxu0 0.0
        %889 = vmatpush1.xpose.msra.mxu0 0.0
        %890 = vmatprep.subr.mxu0 0.0
        %891 = vmatpush1.xpose.msra.mxu0 0.0
        %892 = vmatprep.subr.mxu0 0.0
        %893 = vmatpush1.xpose.msra.mxu0 0.0
        %894 = vmatprep.subr.mxu0 0.0
        %895 = vmatpush1.xpose.msra.mxu0 0.0
        %896 = vmatprep.subr.mxu0 0.0
        %897 = vmatpush1.xpose.msra.mxu0 0.0
        %898 = vmatprep.subr.mxu0 0.0
        %899 = vmatpush1.xpose.msra.mxu0 0.0
        %900 = vmatprep.subr.mxu0 0.0
        %901 = vmatpush1.xpose.msra.mxu0 0.0
        %902 = vmatprep.subr.mxu0 0.0
        %903 = vmatpush1.xpose.msra.mxu0 0.0
        %904 = vmatprep.subr.mxu0 0.0
        %905 = vmatpush1.xpose.msra.mxu0 0.0
        %906 = vmatprep.subr.mxu0 0.0
        %907 = vmatpush1.xpose.msra.mxu0 0.0
        %908 = vmatprep.subr.mxu0 0.0
        %909 = vmatpush1.xpose.msra.mxu0 0.0
        %910 = vmatprep.subr.mxu0 0.0
        %911 = vmatpush1.xpose.msra.mxu0 0.0
        %912 = vmatprep.subr.mxu0 0.0
        %913 = vmatpush1.xpose.msra.mxu0 0.0
        %914 = vmatprep.mubr.f32.mxu0 0.0
        %915 = vmatmul.mubr.f32.gmra.mrb[0].mxu0 %v846
        %v916 = vpop.f32.mrb[0].mxu0
        %v917 = vadd.f32 0.0, %v916
        %v918 = vpop.f32.mrb[0].mxu0
        %919 = vdwg.mxu0
        %v920 = vsel %vm756, %v917, -inf
        %921 = vmax.xlane.f32.xlu0 %v920
        %v922 = vpop.xlane.xlu0 %921
        %v923 = vsub.f32 %v917, %v922
        %v924 = vmul.f32 %v923, 1.442695
        %v925 = vpow.pop %v924
        %v926 = vsel %vm756, %v925, 0.0
        %927 = vadd.xlane.f32.xlu0 %v926
        %v928 = vpop.xlane.xlu0 %927
        %v929 = vrcp.pop %v928
        %v930 = vmul.f32 %v925, %v929
        %v931 = vadd.f32 %v768, %v930
        %933 = vrot.lane.b32.xlu0 %v675, 112
        %v934 = vpop.permute.xlu0 %933
        %v937 = vsel %vm756, %v930, 0
        %939 = vmatprep.subr.mxu0 0.0
        %940 = vmatpush1.msra.mxu0 %v934
        %941 = vmatprep.subr.mxu0 0.0
        %942 = vmatpush1.msra.mxu0 0.0
        %943 = vmatprep.subr.mxu0 0.0
        %944 = vmatpush1.msra.mxu0 0.0
        %945 = vmatprep.subr.mxu0 0.0
        %946 = vmatpush1.msra.mxu0 0.0
        %947 = vmatprep.subr.mxu0 0.0
        %948 = vmatpush1.msra.mxu0 0.0
        %949 = vmatprep.subr.mxu0 0.0
        %950 = vmatpush1.msra.mxu0 0.0
        %951 = vmatprep.subr.mxu0 0.0
        %952 = vmatpush1.msra.mxu0 0.0
        %953 = vmatprep.subr.mxu0 0.0
        %954 = vmatpush1.msra.mxu0 0.0
        %955 = vmatprep.subr.mxu0 0.0
        %956 = vmatpush1.msra.mxu0 0.0
        %957 = vmatprep.subr.mxu0 0.0
        %958 = vmatpush1.msra.mxu0 0.0
        %959 = vmatprep.subr.mxu0 0.0
        %960 = vmatpush1.msra.mxu0 0.0
        %961 = vmatprep.subr.mxu0 0.0
        %962 = vmatpush1.msra.mxu0 0.0
        %963 = vmatprep.subr.mxu0 0.0
        %964 = vmatpush1.msra.mxu0 0.0
        %965 = vmatprep.subr.mxu0 0.0
        %966 = vmatpush1.msra.mxu0 0.0
        %967 = vmatprep.subr.mxu0 0.0
        %968 = vmatpush1.msra.mxu0 0.0
        %969 = vmatprep.subr.mxu0 0.0
        %970 = vmatpush1.msra.mxu0 0.0
        %971 = vmatprep.subr.mxu0 0.0
        %972 = vmatpush1.msra.mxu0 0.0
        %973 = vmatprep.subr.mxu0 0.0
        %974 = vmatpush1.msra.mxu0 0.0
        %975 = vmatprep.subr.mxu0 0.0
        %976 = vmatpush1.msra.mxu0 0.0
        %977 = vmatprep.subr.mxu0 0.0
        %978 = vmatpush1.msra.mxu0 0.0
        %979 = vmatprep.subr.mxu0 0.0
        %980 = vmatpush1.msra.mxu0 0.0
        %981 = vmatprep.subr.mxu0 0.0
        %982 = vmatpush1.msra.mxu0 0.0
        %983 = vmatprep.subr.mxu0 0.0
        %984 = vmatpush1.msra.mxu0 0.0
        %985 = vmatprep.subr.mxu0 0.0
        %986 = vmatpush1.msra.mxu0 0.0
        %987 = vmatprep.subr.mxu0 0.0
        %988 = vmatpush1.msra.mxu0 0.0
        %989 = vmatprep.subr.mxu0 0.0
        %990 = vmatpush1.msra.mxu0 0.0
        %991 = vmatprep.subr.mxu0 0.0
        %992 = vmatpush1.msra.mxu0 0.0
        %993 = vmatprep.subr.mxu0 0.0
        %994 = vmatpush1.msra.mxu0 0.0
        %995 = vmatprep.subr.mxu0 0.0
        %996 = vmatpush1.msra.mxu0 0.0
        %997 = vmatprep.subr.mxu0 0.0
        %998 = vmatpush1.msra.mxu0 0.0
        %999 = vmatprep.subr.mxu0 0.0
        %1000 = vmatpush1.msra.mxu0 0.0
        %1001 = vmatprep.subr.mxu0 0.0
        %1002 = vmatpush1.msra.mxu0 0.0
        %1003 = vmatprep.mubr.f32.mxu0 0.0
        %1004 = vmatmul.mubr.f32.gmra.mrb[0].mxu0 %v937
        %v1005 = vpop.f32.mrb[0].mxu0
        %v1006 = vadd.f32 0.0, %v1005
        %v1007 = vpop.f32.mrb[0].mxu0
        %1008 = vdwg.mxu0
        %1009 = vrot.lane.b32.xlu0 %v678, 96
        %v1010 = vpop.permute.xlu0 %1009
        %1011 = vrot.lane.b32.xlu0 %v606, 96
        %v1012 = vpop.permute.xlu0 %1011
        %v1013 = vsel %vm679, %v1010, 0
        %v1015 = vsel %vm679, %v1012, 0
        %1017 = vmatprep.subr.mxu0 0.0
        %1018 = vmatpush1.xpose.msra.mxu0 %v1015
        %1019 = vmatprep.subr.mxu0 0.0
        %1020 = vmatpush1.xpose.msra.mxu0 0.0
        %1021 = vmatprep.subr.mxu0 0.0
        %1022 = vmatpush1.xpose.msra.mxu0 0.0
        %1023 = vmatprep.subr.mxu0 0.0
        %1024 = vmatpush1.xpose.msra.mxu0 0.0
        %1025 = vmatprep.subr.mxu0 0.0
        %1026 = vmatpush1.xpose.msra.mxu0 0.0
        %1027 = vmatprep.subr.mxu0 0.0
        %1028 = vmatpush1.xpose.msra.mxu0 0.0
        %1029 = vmatprep.subr.mxu0 0.0
        %1030 = vmatpush1.xpose.msra.mxu0 0.0
        %1031 = vmatprep.subr.mxu0 0.0
        %1032 = vmatpush1.xpose.msra.mxu0 0.0
        %1033 = vmatprep.subr.mxu0 0.0
        %1034 = vmatpush1.xpose.msra.mxu0 0.0
        %1035 = vmatprep.subr.mxu0 0.0
        %1036 = vmatpush1.xpose.msra.mxu0 0.0
        %1037 = vmatprep.subr.mxu0 0.0
        %1038 = vmatpush1.xpose.msra.mxu0 0.0
        %1039 = vmatprep.subr.mxu0 0.0
        %1040 = vmatpush1.xpose.msra.mxu0 0.0
        %1041 = vmatprep.subr.mxu0 0.0
        %1042 = vmatpush1.xpose.msra.mxu0 0.0
        %1043 = vmatprep.subr.mxu0 0.0
        %1044 = vmatpush1.xpose.msra.mxu0 0.0
        %1045 = vmatprep.subr.mxu0 0.0
        %1046 = vmatpush1.xpose.msra.mxu0 0.0
        %1047 = vmatprep.subr.mxu0 0.0
        %1048 = vmatpush1.xpose.msra.mxu0 0.0
        %1049 = vmatprep.subr.mxu0 0.0
        %1050 = vmatpush1.xpose.msra.mxu0 0.0
        %1051 = vmatprep.subr.mxu0 0.0
        %1052 = vmatpush1.xpose.msra.mxu0 0.0
        %1053 = vmatprep.subr.mxu0 0.0
        %1054 = vmatpush1.xpose.msra.mxu0 0.0
        %1055 = vmatprep.subr.mxu0 0.0
        %1056 = vmatpush1.xpose.msra.mxu0 0.0
        %1057 = vmatprep.subr.mxu0 0.0
        %1058 = vmatpush1.xpose.msra.mxu0 0.0
        %1059 = vmatprep.subr.mxu0 0.0
        %1060 = vmatpush1.xpose.msra.mxu0 0.0
        %1061 = vmatprep.subr.mxu0 0.0
        %1062 = vmatpush1.xpose.msra.mxu0 0.0
        %1063 = vmatprep.subr.mxu0 0.0
        %1064 = vmatpush1.xpose.msra.mxu0 0.0
        %1065 = vmatprep.subr.mxu0 0.0
        %1066 = vmatpush1.xpose.msra.mxu0 0.0
        %1067 = vmatprep.subr.mxu0 0.0
        %1068 = vmatpush1.xpose.msra.mxu0 0.0
        %1069 = vmatprep.subr.mxu0 0.0
        %1070 = vmatpush1.xpose.msra.mxu0 0.0
        %1071 = vmatprep.subr.mxu0 0.0
        %1072 = vmatpush1.xpose.msra.mxu0 0.0
        %1073 = vmatprep.subr.mxu0 0.0
        %1074 = vmatpush1.xpose.msra.mxu0 0.0
        %1075 = vmatprep.subr.mxu0 0.0
        %1076 = vmatpush1.xpose.msra.mxu0 0.0
        %1077 = vmatprep.subr.mxu0 0.0
        %1078 = vmatpush1.xpose.msra.mxu0 0.0
        %1079 = vmatprep.subr.mxu0 0.0
        %1080 = vmatpush1.xpose.msra.mxu0 0.0
        %1081 = vmatprep.mubr.f32.mxu0 0.0
        %1082 = vmatmul.mubr.f32.gmra.mrb[0].mxu0 %v1013
        %v1083 = vpop.f32.mrb[0].mxu0
        %v1084 = vadd.f32 0.0, %v1083
        %v1085 = vpop.f32.mrb[0].mxu0
        %1086 = vdwg.mxu0
        %v1087 = vsel %vm756, %v1084, -inf
        %1088 = vmax.xlane.f32.xlu0 %v1087
        %v1089 = vpop.xlane.xlu0 %1088
        %v1090 = vsub.f32 %v1084, %v1089
        %v1091 = vmul.f32 %v1090, 1.442695
        %v1092 = vpow.pop %v1091
        %v1093 = vsel %vm756, %v1092, 0.0
        %1094 = vadd.xlane.f32.xlu0 %v1093
        %v1095 = vpop.xlane.xlu0 %1094
        %v1096 = vrcp.pop %v1095
        %v1097 = vmul.f32 %v1092, %v1096
        %v1098 = vadd.f32 %v931, %v1097
        %1099 = vrot.lane.b32.xlu0 %v675, 96
        %v1100 = vpop.permute.xlu0 %1099
        %v1103 = vsel %vm756, %v1097, 0
        %1105 = vmatprep.subr.mxu0 0.0
        %1106 = vmatpush1.msra.mxu0 %v1100
        %1107 = vmatprep.subr.mxu0 0.0
        %1108 = vmatpush1.msra.mxu0 0.0
        %1109 = vmatprep.subr.mxu0 0.0
        %1110 = vmatpush1.msra.mxu0 0.0
        %1111 = vmatprep.subr.mxu0 0.0
        %1112 = vmatpush1.msra.mxu0 0.0
        %1113 = vmatprep.subr.mxu0 0.0
        %1114 = vmatpush1.msra.mxu0 0.0
        %1115 = vmatprep.subr.mxu0 0.0
        %1116 = vmatpush1.msra.mxu0 0.0
        %1117 = vmatprep.subr.mxu0 0.0
        %1118 = vmatpush1.msra.mxu0 0.0
        %1119 = vmatprep.subr.mxu0 0.0
        %1120 = vmatpush1.msra.mxu0 0.0
        %1121 = vmatprep.subr.mxu0 0.0
        %1122 = vmatpush1.msra.mxu0 0.0
        %1123 = vmatprep.subr.mxu0 0.0
        %1124 = vmatpush1.msra.mxu0 0.0
        %1125 = vmatprep.subr.mxu0 0.0
        %1126 = vmatpush1.msra.mxu0 0.0
        %1127 = vmatprep.subr.mxu0 0.0
        %1128 = vmatpush1.msra.mxu0 0.0
        %1129 = vmatprep.subr.mxu0 0.0
        %1130 = vmatpush1.msra.mxu0 0.0
        %1131 = vmatprep.subr.mxu0 0.0
        %1132 = vmatpush1.msra.mxu0 0.0
        %1133 = vmatprep.subr.mxu0 0.0
        %1134 = vmatpush1.msra.mxu0 0.0
        %1135 = vmatprep.subr.mxu0 0.0
        %1136 = vmatpush1.msra.mxu0 0.0
        %1137 = vmatprep.subr.mxu0 0.0
        %1138 = vmatpush1.msra.mxu0 0.0
        %1139 = vmatprep.subr.mxu0 0.0
        %1140 = vmatpush1.msra.mxu0 0.0
        %1141 = vmatprep.subr.mxu0 0.0
        %1142 = vmatpush1.msra.mxu0 0.0
        %1143 = vmatprep.subr.mxu0 0.0
        %1144 = vmatpush1.msra.mxu0 0.0
        %1145 = vmatprep.subr.mxu0 0.0
        %1146 = vmatpush1.msra.mxu0 0.0
        %1147 = vmatprep.subr.mxu0 0.0
        %1148 = vmatpush1.msra.mxu0 0.0
        %1149 = vmatprep.subr.mxu0 0.0
        %1150 = vmatpush1.msra.mxu0 0.0
        %1151 = vmatprep.subr.mxu0 0.0
        %1152 = vmatpush1.msra.mxu0 0.0
        %1153 = vmatprep.subr.mxu0 0.0
        %1154 = vmatpush1.msra.mxu0 0.0
        %1155 = vmatprep.subr.mxu0 0.0
        %1156 = vmatpush1.msra.mxu0 0.0
        %1157 = vmatprep.subr.mxu0 0.0
        %1158 = vmatpush1.msra.mxu0 0.0
        %1159 = vmatprep.subr.mxu0 0.0
        %1160 = vmatpush1.msra.mxu0 0.0
        %1161 = vmatprep.subr.mxu0 0.0
        %1162 = vmatpush1.msra.mxu0 0.0
        %1163 = vmatprep.subr.mxu0 0.0
        %1164 = vmatpush1.msra.mxu0 0.0
        %1165 = vmatprep.subr.mxu0 0.0
        %1166 = vmatpush1.msra.mxu0 0.0
        %1167 = vmatprep.subr.mxu0 0.0
        %1168 = vmatpush1.msra.mxu0 0.0
        %1169 = vmatprep.mubr.f32.mxu0 0.0
        %1170 = vmatmul.mubr.f32.gmra.mrb[0].mxu0 %v1103
        %v1171 = vpop.f32.mrb[0].mxu0
        %v1172 = vadd.f32 0.0, %v1171
        %v1173 = vpop.f32.mrb[0].mxu0
        %1174 = vdwg.mxu0
        %1175 = vrot.lane.b32.xlu0 %v678, 80
        %v1176 = vpop.permute.xlu0 %1175
        %1177 = vrot.lane.b32.xlu0 %v606, 80
        %v1178 = vpop.permute.xlu0 %1177
        %v1179 = vsel %vm679, %v1176, 0
        %v1181 = vsel %vm679, %v1178, 0
        %1183 = vmatprep.subr.mxu0 0.0
        %1184 = vmatpush1.xpose.msra.mxu0 %v1181
        %1185 = vmatprep.subr.mxu0 0.0
        %1186 = vmatpush1.xpose.msra.mxu0 0.0
        %1187 = vmatprep.subr.mxu0 0.0
        %1188 = vmatpush1.xpose.msra.mxu0 0.0
        %1189 = vmatprep.subr.mxu0 0.0
        %1190 = vmatpush1.xpose.msra.mxu0 0.0
        %1191 = vmatprep.subr.mxu0 0.0
        %1192 = vmatpush1.xpose.msra.mxu0 0.0
        %1193 = vmatprep.subr.mxu0 0.0
        %1194 = vmatpush1.xpose.msra.mxu0 0.0
        %1195 = vmatprep.subr.mxu0 0.0
        %1196 = vmatpush1.xpose.msra.mxu0 0.0
        %1197 = vmatprep.subr.mxu0 0.0
        %1198 = vmatpush1.xpose.msra.mxu0 0.0
        %1199 = vmatprep.subr.mxu0 0.0
        %1200 = vmatpush1.xpose.msra.mxu0 0.0
        %1201 = vmatprep.subr.mxu0 0.0
        %1202 = vmatpush1.xpose.msra.mxu0 0.0
        %1203 = vmatprep.subr.mxu0 0.0
        %1204 = vmatpush1.xpose.msra.mxu0 0.0
        %1205 = vmatprep.subr.mxu0 0.0
        %1206 = vmatpush1.xpose.msra.mxu0 0.0
        %1207 = vmatprep.subr.mxu0 0.0
        %1208 = vmatpush1.xpose.msra.mxu0 0.0
        %1209 = vmatprep.subr.mxu0 0.0
        %1210 = vmatpush1.xpose.msra.mxu0 0.0
        %1211 = vmatprep.subr.mxu0 0.0
        %1212 = vmatpush1.xpose.msra.mxu0 0.0
        %1213 = vmatprep.subr.mxu0 0.0
        %1214 = vmatpush1.xpose.msra.mxu0 0.0
        %1215 = vmatprep.subr.mxu0 0.0
        %1216 = vmatpush1.xpose.msra.mxu0 0.0
        %1217 = vmatprep.subr.mxu0 0.0
        %1218 = vmatpush1.xpose.msra.mxu0 0.0
        %1219 = vmatprep.subr.mxu0 0.0
        %1220 = vmatpush1.xpose.msra.mxu0 0.0
        %1221 = vmatprep.subr.mxu0 0.0
        %1222 = vmatpush1.xpose.msra.mxu0 0.0
        %1223 = vmatprep.subr.mxu0 0.0
        %1224 = vmatpush1.xpose.msra.mxu0 0.0
        %1225 = vmatprep.subr.mxu0 0.0
        %1226 = vmatpush1.xpose.msra.mxu0 0.0
        %1227 = vmatprep.subr.mxu0 0.0
        %1228 = vmatpush1.xpose.msra.mxu0 0.0
        %1229 = vmatprep.subr.mxu0 0.0
        %1230 = vmatpush1.xpose.msra.mxu0 0.0
        %1231 = vmatprep.subr.mxu0 0.0
        %1232 = vmatpush1.xpose.msra.mxu0 0.0
        %1233 = vmatprep.subr.mxu0 0.0
        %1234 = vmatpush1.xpose.msra.mxu0 0.0
        %1235 = vmatprep.subr.mxu0 0.0
        %1236 = vmatpush1.xpose.msra.mxu0 0.0
        %1237 = vmatprep.subr.mxu0 0.0
        %1238 = vmatpush1.xpose.msra.mxu0 0.0
        %1239 = vmatprep.subr.mxu0 0.0
        %1240 = vmatpush1.xpose.msra.mxu0 0.0
        %1241 = vmatprep.subr.mxu0 0.0
        %1242 = vmatpush1.xpose.msra.mxu0 0.0
        %1243 = vmatprep.subr.mxu0 0.0
        %1244 = vmatpush1.xpose.msra.mxu0 0.0
        %1245 = vmatprep.subr.mxu0 0.0
        %1246 = vmatpush1.xpose.msra.mxu0 0.0
        %1247 = vmatprep.mubr.f32.mxu0 0.0
        %1248 = vmatmul.mubr.f32.gmra.mrb[0].mxu0 %v1179
        %v1249 = vpop.f32.mrb[0].mxu0
        %v1250 = vadd.f32 0.0, %v1249
        %v1251 = vpop.f32.mrb[0].mxu0
        %1252 = vdwg.mxu0
        %v1253 = vsel %vm756, %v1250, -inf
        %1254 = vmax.xlane.f32.xlu0 %v1253
        %v1255 = vpop.xlane.xlu0 %1254
        %v1256 = vsub.f32 %v1250, %v1255
        %v1257 = vmul.f32 %v1256, 1.442695
        %v1258 = vpow.pop %v1257
        %v1259 = vsel %vm756, %v1258, 0.0
        %1260 = vadd.xlane.f32.xlu0 %v1259
        %v1261 = vpop.xlane.xlu0 %1260
        %v1262 = vrcp.pop %v1261
        %v1263 = vmul.f32 %v1258, %v1262
        %v1264 = vadd.f32 %v1098, %v1263
        %1265 = vrot.lane.b32.xlu0 %v675, 80
        %v1266 = vpop.permute.xlu0 %1265
        %v1269 = vsel %vm756, %v1263, 0
        %1271 = vmatprep.subr.mxu0 0.0
        %1272 = vmatpush1.msra.mxu0 %v1266
        %1273 = vmatprep.subr.mxu0 0.0
        %1274 = vmatpush1.msra.mxu0 0.0
        %1275 = vmatprep.subr.mxu0 0.0
        %1276 = vmatpush1.msra.mxu0 0.0
        %1277 = vmatprep.subr.mxu0 0.0
        %1278 = vmatpush1.msra.mxu0 0.0
        %1279 = vmatprep.subr.mxu0 0.0
        %1280 = vmatpush1.msra.mxu0 0.0
        %1281 = vmatprep.subr.mxu0 0.0
        %1282 = vmatpush1.msra.mxu0 0.0
        %1283 = vmatprep.subr.mxu0 0.0
        %1284 = vmatpush1.msra.mxu0 0.0
        %1285 = vmatprep.subr.mxu0 0.0
        %1286 = vmatpush1.msra.mxu0 0.0
        %1287 = vmatprep.subr.mxu0 0.0
        %1288 = vmatpush1.msra.mxu0 0.0
        %1289 = vmatprep.subr.mxu0 0.0
        %1290 = vmatpush1.msra.mxu0 0.0
        %1291 = vmatprep.subr.mxu0 0.0
        %1292 = vmatpush1.msra.mxu0 0.0
        %1293 = vmatprep.subr.mxu0 0.0
        %1294 = vmatpush1.msra.mxu0 0.0
        %1295 = vmatprep.subr.mxu0 0.0
        %1296 = vmatpush1.msra.mxu0 0.0
        %1297 = vmatprep.subr.mxu0 0.0
        %1298 = vmatpush1.msra.mxu0 0.0
        %1299 = vmatprep.subr.mxu0 0.0
        %1300 = vmatpush1.msra.mxu0 0.0
        %1301 = vmatprep.subr.mxu0 0.0
        %1302 = vmatpush1.msra.mxu0 0.0
        %1303 = vmatprep.subr.mxu0 0.0
        %1304 = vmatpush1.msra.mxu0 0.0
        %1305 = vmatprep.subr.mxu0 0.0
        %1306 = vmatpush1.msra.mxu0 0.0
        %1307 = vmatprep.subr.mxu0 0.0
        %1308 = vmatpush1.msra.mxu0 0.0
        %1309 = vmatprep.subr.mxu0 0.0
        %1310 = vmatpush1.msra.mxu0 0.0
        %1311 = vmatprep.subr.mxu0 0.0
        %1312 = vmatpush1.msra.mxu0 0.0
        %1313 = vmatprep.subr.mxu0 0.0
        %1314 = vmatpush1.msra.mxu0 0.0
        %1315 = vmatprep.subr.mxu0 0.0
        %1316 = vmatpush1.msra.mxu0 0.0
        %1317 = vmatprep.subr.mxu0 0.0
        %1318 = vmatpush1.msra.mxu0 0.0
        %1319 = vmatprep.subr.mxu0 0.0
        %1320 = vmatpush1.msra.mxu0 0.0
        %1321 = vmatprep.subr.mxu0 0.0
        %1322 = vmatpush1.msra.mxu0 0.0
        %1323 = vmatprep.subr.mxu0 0.0
        %1324 = vmatpush1.msra.mxu0 0.0
        %1325 = vmatprep.subr.mxu0 0.0
        %1326 = vmatpush1.msra.mxu0 0.0
        %1327 = vmatprep.subr.mxu0 0.0
        %1328 = vmatpush1.msra.mxu0 0.0
        %1329 = vmatprep.subr.mxu0 0.0
        %1330 = vmatpush1.msra.mxu0 0.0
        %1331 = vmatprep.subr.mxu0 0.0
        %1332 = vmatpush1.msra.mxu0 0.0
        %1333 = vmatprep.subr.mxu0 0.0
        %1334 = vmatpush1.msra.mxu0 0.0
        %1335 = vmatprep.mubr.f32.mxu0 0.0
        %1336 = vmatmul.mubr.f32.gmra.mrb[0].mxu0 %v1269
        %v1337 = vpop.f32.mrb[0].mxu0
        %v1338 = vadd.f32 0.0, %v1337
        %v1339 = vpop.f32.mrb[0].mxu0
        %1340 = vdwg.mxu0
        %1341 = vrot.lane.b32.xlu0 %v678, 64
        %v1342 = vpop.permute.xlu0 %1341
        %1343 = vrot.lane.b32.xlu0 %v606, 64
        %v1344 = vpop.permute.xlu0 %1343
        %v1345 = vsel %vm679, %v1342, 0
        %v1347 = vsel %vm679, %v1344, 0
        %1349 = vmatprep.subr.mxu0 0.0
        %1350 = vmatpush1.xpose.msra.mxu0 %v1347
        %1351 = vmatprep.subr.mxu0 0.0
        %1352 = vmatpush1.xpose.msra.mxu0 0.0
        %1353 = vmatprep.subr.mxu0 0.0
        %1354 = vmatpush1.xpose.msra.mxu0 0.0
        %1355 = vmatprep.subr.mxu0 0.0
        %1356 = vmatpush1.xpose.msra.mxu0 0.0
        %1357 = vmatprep.subr.mxu0 0.0
        %1358 = vmatpush1.xpose.msra.mxu0 0.0
        %1359 = vmatprep.subr.mxu0 0.0
        %1360 = vmatpush1.xpose.msra.mxu0 0.0
        %1361 = vmatprep.subr.mxu0 0.0
        %1362 = vmatpush1.xpose.msra.mxu0 0.0
        %1363 = vmatprep.subr.mxu0 0.0
        %1364 = vmatpush1.xpose.msra.mxu0 0.0
        %1365 = vmatprep.subr.mxu0 0.0
        %1366 = vmatpush1.xpose.msra.mxu0 0.0
        %1367 = vmatprep.subr.mxu0 0.0
        %1368 = vmatpush1.xpose.msra.mxu0 0.0
        %1369 = vmatprep.subr.mxu0 0.0
        %1370 = vmatpush1.xpose.msra.mxu0 0.0
        %1371 = vmatprep.subr.mxu0 0.0
        %1372 = vmatpush1.xpose.msra.mxu0 0.0
        %1373 = vmatprep.subr.mxu0 0.0
        %1374 = vmatpush1.xpose.msra.mxu0 0.0
        %1375 = vmatprep.subr.mxu0 0.0
        %1376 = vmatpush1.xpose.msra.mxu0 0.0
        %1377 = vmatprep.subr.mxu0 0.0
        %1378 = vmatpush1.xpose.msra.mxu0 0.0
        %1379 = vmatprep.subr.mxu0 0.0
        %1380 = vmatpush1.xpose.msra.mxu0 0.0
        %1381 = vmatprep.subr.mxu0 0.0
        %1382 = vmatpush1.xpose.msra.mxu0 0.0
        %1383 = vmatprep.subr.mxu0 0.0
        %1384 = vmatpush1.xpose.msra.mxu0 0.0
        %1385 = vmatprep.subr.mxu0 0.0
        %1386 = vmatpush1.xpose.msra.mxu0 0.0
        %1387 = vmatprep.subr.mxu0 0.0
        %1388 = vmatpush1.xpose.msra.mxu0 0.0
        %1389 = vmatprep.subr.mxu0 0.0
        %1390 = vmatpush1.xpose.msra.mxu0 0.0
        %1391 = vmatprep.subr.mxu0 0.0
        %1392 = vmatpush1.xpose.msra.mxu0 0.0
        %1393 = vmatprep.subr.mxu0 0.0
        %1394 = vmatpush1.xpose.msra.mxu0 0.0
        %1395 = vmatprep.subr.mxu0 0.0
        %1396 = vmatpush1.xpose.msra.mxu0 0.0
        %1397 = vmatprep.subr.mxu0 0.0
        %1398 = vmatpush1.xpose.msra.mxu0 0.0
        %1399 = vmatprep.subr.mxu0 0.0
        %1400 = vmatpush1.xpose.msra.mxu0 0.0
        %1401 = vmatprep.subr.mxu0 0.0
        %1402 = vmatpush1.xpose.msra.mxu0 0.0
        %1403 = vmatprep.subr.mxu0 0.0
        %1404 = vmatpush1.xpose.msra.mxu0 0.0
        %1405 = vmatprep.subr.mxu0 0.0
        %1406 = vmatpush1.xpose.msra.mxu0 0.0
        %1407 = vmatprep.subr.mxu0 0.0
        %1408 = vmatpush1.xpose.msra.mxu0 0.0
        %1409 = vmatprep.subr.mxu0 0.0
        %1410 = vmatpush1.xpose.msra.mxu0 0.0
        %1411 = vmatprep.subr.mxu0 0.0
        %1412 = vmatpush1.xpose.msra.mxu0 0.0
        %1413 = vmatprep.mubr.f32.mxu0 0.0
        %1414 = vmatmul.mubr.f32.gmra.mrb[0].mxu0 %v1345
        %v1415 = vpop.f32.mrb[0].mxu0
        %v1416 = vadd.f32 0.0, %v1415
        %v1417 = vpop.f32.mrb[0].mxu0
        %1418 = vdwg.mxu0
        %v1419 = vsel %vm756, %v1416, -inf
        %1420 = vmax.xlane.f32.xlu0 %v1419
        %v1421 = vpop.xlane.xlu0 %1420
        %v1422 = vsub.f32 %v1416, %v1421
        %v1423 = vmul.f32 %v1422, 1.442695
        %v1424 = vpow.pop %v1423
        %v1425 = vsel %vm756, %v1424, 0.0
        %1426 = vadd.xlane.f32.xlu0 %v1425
        %v1427 = vpop.xlane.xlu0 %1426
        %v1428 = vrcp.pop %v1427
        %v1429 = vmul.f32 %v1424, %v1428
        %v1430 = vadd.f32 %v1264, %v1429
        %1431 = vrot.lane.b32.xlu0 %v675, 64
        %v1432 = vpop.permute.xlu0 %1431
        %v1435 = vsel %vm756, %v1429, 0
        %1437 = vmatprep.subr.mxu0 0.0
        %1438 = vmatpush1.msra.mxu0 %v1432
        %1439 = vmatprep.subr.mxu0 0.0
        %1440 = vmatpush1.msra.mxu0 0.0
        %1441 = vmatprep.subr.mxu0 0.0
        %1442 = vmatpush1.msra.mxu0 0.0
        %1443 = vmatprep.subr.mxu0 0.0
        %1444 = vmatpush1.msra.mxu0 0.0
        %1445 = vmatprep.subr.mxu0 0.0
        %1446 = vmatpush1.msra.mxu0 0.0
        %1447 = vmatprep.subr.mxu0 0.0
        %1448 = vmatpush1.msra.mxu0 0.0
        %1449 = vmatprep.subr.mxu0 0.0
        %1450 = vmatpush1.msra.mxu0 0.0
        %1451 = vmatprep.subr.mxu0 0.0
        %1452 = vmatpush1.msra.mxu0 0.0
        %1453 = vmatprep.subr.mxu0 0.0
        %1454 = vmatpush1.msra.mxu0 0.0
        %1455 = vmatprep.subr.mxu0 0.0
        %1456 = vmatpush1.msra.mxu0 0.0
        %1457 = vmatprep.subr.mxu0 0.0
        %1458 = vmatpush1.msra.mxu0 0.0
        %1459 = vmatprep.subr.mxu0 0.0
        %1460 = vmatpush1.msra.mxu0 0.0
        %1461 = vmatprep.subr.mxu0 0.0
        %1462 = vmatpush1.msra.mxu0 0.0
        %1463 = vmatprep.subr.mxu0 0.0
        %1464 = vmatpush1.msra.mxu0 0.0
        %1465 = vmatprep.subr.mxu0 0.0
        %1466 = vmatpush1.msra.mxu0 0.0
        %1467 = vmatprep.subr.mxu0 0.0
        %1468 = vmatpush1.msra.mxu0 0.0
        %1469 = vmatprep.subr.mxu0 0.0
        %1470 = vmatpush1.msra.mxu0 0.0
        %1471 = vmatprep.subr.mxu0 0.0
        %1472 = vmatpush1.msra.mxu0 0.0
        %1473 = vmatprep.subr.mxu0 0.0
        %1474 = vmatpush1.msra.mxu0 0.0
        %1475 = vmatprep.subr.mxu0 0.0
        %1476 = vmatpush1.msra.mxu0 0.0
        %1477 = vmatprep.subr.mxu0 0.0
        %1478 = vmatpush1.msra.mxu0 0.0
        %1479 = vmatprep.subr.mxu0 0.0
        %1480 = vmatpush1.msra.mxu0 0.0
        %1481 = vmatprep.subr.mxu0 0.0
        %1482 = vmatpush1.msra.mxu0 0.0
        %1483 = vmatprep.subr.mxu0 0.0
        %1484 = vmatpush1.msra.mxu0 0.0
        %1485 = vmatprep.subr.mxu0 0.0
        %1486 = vmatpush1.msra.mxu0 0.0
        %1487 = vmatprep.subr.mxu0 0.0
        %1488 = vmatpush1.msra.mxu0 0.0
        %1489 = vmatprep.subr.mxu0 0.0
        %1490 = vmatpush1.msra.mxu0 0.0
        %1491 = vmatprep.subr.mxu0 0.0
        %1492 = vmatpush1.msra.mxu0 0.0
        %1493 = vmatprep.subr.mxu0 0.0
        %1494 = vmatpush1.msra.mxu0 0.0
        %1495 = vmatprep.subr.mxu0 0.0
        %1496 = vmatpush1.msra.mxu0 0.0
        %1497 = vmatprep.subr.mxu0 0.0
        %1498 = vmatpush1.msra.mxu0 0.0
        %1499 = vmatprep.subr.mxu0 0.0
        %1500 = vmatpush1.msra.mxu0 0.0
        %1501 = vmatprep.mubr.f32.mxu0 0.0
        %1502 = vmatmul.mubr.f32.gmra.mrb[0].mxu0 %v1435
        %v1503 = vpop.f32.mrb[0].mxu0
        %v1504 = vadd.f32 0.0, %v1503
        %v1505 = vpop.f32.mrb[0].mxu0
        %1506 = vdwg.mxu0
        %1507 = vrot.lane.b32.xlu0 %v678, 48
        %v1508 = vpop.permute.xlu0 %1507
        %1509 = vrot.lane.b32.xlu0 %v606, 48
        %v1510 = vpop.permute.xlu0 %1509
        %v1511 = vsel %vm679, %v1508, 0
        %v1513 = vsel %vm679, %v1510, 0
        %1515 = vmatprep.subr.mxu0 0.0
        %1516 = vmatpush1.xpose.msra.mxu0 %v1513
        %1517 = vmatprep.subr.mxu0 0.0
        %1518 = vmatpush1.xpose.msra.mxu0 0.0
        %1519 = vmatprep.subr.mxu0 0.0
        %1520 = vmatpush1.xpose.msra.mxu0 0.0
        %1521 = vmatprep.subr.mxu0 0.0
        %1522 = vmatpush1.xpose.msra.mxu0 0.0
        %1523 = vmatprep.subr.mxu0 0.0
        %1524 = vmatpush1.xpose.msra.mxu0 0.0
        %1525 = vmatprep.subr.mxu0 0.0
        %1526 = vmatpush1.xpose.msra.mxu0 0.0
        %1527 = vmatprep.subr.mxu0 0.0
        %1528 = vmatpush1.xpose.msra.mxu0 0.0
        %1529 = vmatprep.subr.mxu0 0.0
        %1530 = vmatpush1.xpose.msra.mxu0 0.0
        %1531 = vmatprep.subr.mxu0 0.0
        %1532 = vmatpush1.xpose.msra.mxu0 0.0
        %1533 = vmatprep.subr.mxu0 0.0
        %1534 = vmatpush1.xpose.msra.mxu0 0.0
        %1535 = vmatprep.subr.mxu0 0.0
        %1536 = vmatpush1.xpose.msra.mxu0 0.0
        %1537 = vmatprep.subr.mxu0 0.0
        %1538 = vmatpush1.xpose.msra.mxu0 0.0
        %1539 = vmatprep.subr.mxu0 0.0
        %1540 = vmatpush1.xpose.msra.mxu0 0.0
        %1541 = vmatprep.subr.mxu0 0.0
        %1542 = vmatpush1.xpose.msra.mxu0 0.0
        %1543 = vmatprep.subr.mxu0 0.0
        %1544 = vmatpush1.xpose.msra.mxu0 0.0
        %1545 = vmatprep.subr.mxu0 0.0
        %1546 = vmatpush1.xpose.msra.mxu0 0.0
        %1547 = vmatprep.subr.mxu0 0.0
        %1548 = vmatpush1.xpose.msra.mxu0 0.0
        %1549 = vmatprep.subr.mxu0 0.0
        %1550 = vmatpush1.xpose.msra.mxu0 0.0
        %1551 = vmatprep.subr.mxu0 0.0
        %1552 = vmatpush1.xpose.msra.mxu0 0.0
        %1553 = vmatprep.subr.mxu0 0.0
        %1554 = vmatpush1.xpose.msra.mxu0 0.0
        %1555 = vmatprep.subr.mxu0 0.0
        %1556 = vmatpush1.xpose.msra.mxu0 0.0
        %1557 = vmatprep.subr.mxu0 0.0
        %1558 = vmatpush1.xpose.msra.mxu0 0.0
        %1559 = vmatprep.subr.mxu0 0.0
        %1560 = vmatpush1.xpose.msra.mxu0 0.0
        %1561 = vmatprep.subr.mxu0 0.0
        %1562 = vmatpush1.xpose.msra.mxu0 0.0
        %1563 = vmatprep.subr.mxu0 0.0
        %1564 = vmatpush1.xpose.msra.mxu0 0.0
        %1565 = vmatprep.subr.mxu0 0.0
        %1566 = vmatpush1.xpose.msra.mxu0 0.0
        %1567 = vmatprep.subr.mxu0 0.0
        %1568 = vmatpush1.xpose.msra.mxu0 0.0
        %1569 = vmatprep.subr.mxu0 0.0
        %1570 = vmatpush1.xpose.msra.mxu0 0.0
        %1571 = vmatprep.subr.mxu0 0.0
        %1572 = vmatpush1.xpose.msra.mxu0 0.0
        %1573 = vmatprep.subr.mxu0 0.0
        %1574 = vmatpush1.xpose.msra.mxu0 0.0
        %1575 = vmatprep.subr.mxu0 0.0
        %1576 = vmatpush1.xpose.msra.mxu0 0.0
        %1577 = vmatprep.subr.mxu0 0.0
        %1578 = vmatpush1.xpose.msra.mxu0 0.0
        %1579 = vmatprep.mubr.f32.mxu0 0.0
        %1580 = vmatmul.mubr.f32.gmra.mrb[0].mxu0 %v1511
        %v1581 = vpop.f32.mrb[0].mxu0
        %v1582 = vadd.f32 0.0, %v1581
        %v1583 = vpop.f32.mrb[0].mxu0
        %1584 = vdwg.mxu0
        %v1585 = vsel %vm756, %v1582, -inf
        %1586 = vmax.xlane.f32.xlu0 %v1585
        %v1587 = vpop.xlane.xlu0 %1586
        %v1588 = vsub.f32 %v1582, %v1587
        %v1589 = vmul.f32 %v1588, 1.442695
        %v1590 = vpow.pop %v1589
        %v1591 = vsel %vm756, %v1590, 0.0
        %1592 = vadd.xlane.f32.xlu0 %v1591
        %v1593 = vpop.xlane.xlu0 %1592
        %v1594 = vrcp.pop %v1593
        %v1595 = vmul.f32 %v1590, %v1594
        %v1596 = vadd.f32 %v1430, %v1595
        %1597 = vrot.lane.b32.xlu0 %v675, 48
        %v1598 = vpop.permute.xlu0 %1597
        %v1601 = vsel %vm756, %v1595, 0
        %1603 = vmatprep.subr.mxu0 0.0
        %1604 = vmatpush1.msra.mxu0 %v1598
        %1605 = vmatprep.subr.mxu0 0.0
        %1606 = vmatpush1.msra.mxu0 0.0
        %1607 = vmatprep.subr.mxu0 0.0
        %1608 = vmatpush1.msra.mxu0 0.0
        %1609 = vmatprep.subr.mxu0 0.0
        %1610 = vmatpush1.msra.mxu0 0.0
        %1611 = vmatprep.subr.mxu0 0.0
        %1612 = vmatpush1.msra.mxu0 0.0
        %1613 = vmatprep.subr.mxu0 0.0
        %1614 = vmatpush1.msra.mxu0 0.0
        %1615 = vmatprep.subr.mxu0 0.0
        %1616 = vmatpush1.msra.mxu0 0.0
        %1617 = vmatprep.subr.mxu0 0.0
        %1618 = vmatpush1.msra.mxu0 0.0
        %1619 = vmatprep.subr.mxu0 0.0
        %1620 = vmatpush1.msra.mxu0 0.0
        %1621 = vmatprep.subr.mxu0 0.0
        %1622 = vmatpush1.msra.mxu0 0.0
        %1623 = vmatprep.subr.mxu0 0.0
        %1624 = vmatpush1.msra.mxu0 0.0
        %1625 = vmatprep.subr.mxu0 0.0
        %1626 = vmatpush1.msra.mxu0 0.0
        %1627 = vmatprep.subr.mxu0 0.0
        %1628 = vmatpush1.msra.mxu0 0.0
        %1629 = vmatprep.subr.mxu0 0.0
        %1630 = vmatpush1.msra.mxu0 0.0
        %1631 = vmatprep.subr.mxu0 0.0
        %1632 = vmatpush1.msra.mxu0 0.0
        %1633 = vmatprep.subr.mxu0 0.0
        %1634 = vmatpush1.msra.mxu0 0.0
        %1635 = vmatprep.subr.mxu0 0.0
        %1636 = vmatpush1.msra.mxu0 0.0
        %1637 = vmatprep.subr.mxu0 0.0
        %1638 = vmatpush1.msra.mxu0 0.0
        %1639 = vmatprep.subr.mxu0 0.0
        %1640 = vmatpush1.msra.mxu0 0.0
        %1641 = vmatprep.subr.mxu0 0.0
        %1642 = vmatpush1.msra.mxu0 0.0
        %1643 = vmatprep.subr.mxu0 0.0
        %1644 = vmatpush1.msra.mxu0 0.0
        %1645 = vmatprep.subr.mxu0 0.0
        %1646 = vmatpush1.msra.mxu0 0.0
        %1647 = vmatprep.subr.mxu0 0.0
        %1648 = vmatpush1.msra.mxu0 0.0
        %1649 = vmatprep.subr.mxu0 0.0
        %1650 = vmatpush1.msra.mxu0 0.0
        %1651 = vmatprep.subr.mxu0 0.0
        %1652 = vmatpush1.msra.mxu0 0.0
        %1653 = vmatprep.subr.mxu0 0.0
        %1654 = vmatpush1.msra.mxu0 0.0
        %1655 = vmatprep.subr.mxu0 0.0
        %1656 = vmatpush1.msra.mxu0 0.0
        %1657 = vmatprep.subr.mxu0 0.0
        %1658 = vmatpush1.msra.mxu0 0.0
        %1659 = vmatprep.subr.mxu0 0.0
        %1660 = vmatpush1.msra.mxu0 0.0
        %1661 = vmatprep.subr.mxu0 0.0
        %1662 = vmatpush1.msra.mxu0 0.0
        %1663 = vmatprep.subr.mxu0 0.0
        %1664 = vmatpush1.msra.mxu0 0.0
        %1665 = vmatprep.subr.mxu0 0.0
        %1666 = vmatpush1.msra.mxu0 0.0
        %1667 = vmatprep.mubr.f32.mxu0 0.0
        %1668 = vmatmul.mubr.f32.gmra.mrb[0].mxu0 %v1601
        %v1669 = vpop.f32.mrb[0].mxu0
        %v1670 = vadd.f32 0.0, %v1669
        %v1671 = vpop.f32.mrb[0].mxu0
        %1672 = vdwg.mxu0
        %1673 = vrot.lane.b32.xlu0 %v678, 32
        %v1674 = vpop.permute.xlu0 %1673
        %1675 = vrot.lane.b32.xlu0 %v606, 32
        %v1676 = vpop.permute.xlu0 %1675
        %v1677 = vsel %vm679, %v1674, 0
        %v1679 = vsel %vm679, %v1676, 0
        %1681 = vmatprep.subr.mxu0 0.0
        %1682 = vmatpush1.xpose.msra.mxu0 %v1679
        %1683 = vmatprep.subr.mxu0 0.0
        %1684 = vmatpush1.xpose.msra.mxu0 0.0
        %1685 = vmatprep.subr.mxu0 0.0
        %1686 = vmatpush1.xpose.msra.mxu0 0.0
        %1687 = vmatprep.subr.mxu0 0.0
        %1688 = vmatpush1.xpose.msra.mxu0 0.0
        %1689 = vmatprep.subr.mxu0 0.0
        %1690 = vmatpush1.xpose.msra.mxu0 0.0
        %1691 = vmatprep.subr.mxu0 0.0
        %1692 = vmatpush1.xpose.msra.mxu0 0.0
        %1693 = vmatprep.subr.mxu0 0.0
        %1694 = vmatpush1.xpose.msra.mxu0 0.0
        %1695 = vmatprep.subr.mxu0 0.0
        %1696 = vmatpush1.xpose.msra.mxu0 0.0
        %1697 = vmatprep.subr.mxu0 0.0
        %1698 = vmatpush1.xpose.msra.mxu0 0.0
        %1699 = vmatprep.subr.mxu0 0.0
        %1700 = vmatpush1.xpose.msra.mxu0 0.0
        %1701 = vmatprep.subr.mxu0 0.0
        %1702 = vmatpush1.xpose.msra.mxu0 0.0
        %1703 = vmatprep.subr.mxu0 0.0
        %1704 = vmatpush1.xpose.msra.mxu0 0.0
        %1705 = vmatprep.subr.mxu0 0.0
        %1706 = vmatpush1.xpose.msra.mxu0 0.0
        %1707 = vmatprep.subr.mxu0 0.0
        %1708 = vmatpush1.xpose.msra.mxu0 0.0
        %1709 = vmatprep.subr.mxu0 0.0
        %1710 = vmatpush1.xpose.msra.mxu0 0.0
        %1711 = vmatprep.subr.mxu0 0.0
        %1712 = vmatpush1.xpose.msra.mxu0 0.0
        %1713 = vmatprep.subr.mxu0 0.0
        %1714 = vmatpush1.xpose.msra.mxu0 0.0
        %1715 = vmatprep.subr.mxu0 0.0
        %1716 = vmatpush1.xpose.msra.mxu0 0.0
        %1717 = vmatprep.subr.mxu0 0.0
        %1718 = vmatpush1.xpose.msra.mxu0 0.0
        %1719 = vmatprep.subr.mxu0 0.0
        %1720 = vmatpush1.xpose.msra.mxu0 0.0
        %1721 = vmatprep.subr.mxu0 0.0
        %1722 = vmatpush1.xpose.msra.mxu0 0.0
        %1723 = vmatprep.subr.mxu0 0.0
        %1724 = vmatpush1.xpose.msra.mxu0 0.0
        %1725 = vmatprep.subr.mxu0 0.0
        %1726 = vmatpush1.xpose.msra.mxu0 0.0
        %1727 = vmatprep.subr.mxu0 0.0
        %1728 = vmatpush1.xpose.msra.mxu0 0.0
        %1729 = vmatprep.subr.mxu0 0.0
        %1730 = vmatpush1.xpose.msra.mxu0 0.0
        %1731 = vmatprep.subr.mxu0 0.0
        %1732 = vmatpush1.xpose.msra.mxu0 0.0
        %1733 = vmatprep.subr.mxu0 0.0
        %1734 = vmatpush1.xpose.msra.mxu0 0.0
        %1735 = vmatprep.subr.mxu0 0.0
        %1736 = vmatpush1.xpose.msra.mxu0 0.0
        %1737 = vmatprep.subr.mxu0 0.0
        %1738 = vmatpush1.xpose.msra.mxu0 0.0
        %1739 = vmatprep.subr.mxu0 0.0
        %1740 = vmatpush1.xpose.msra.mxu0 0.0
        %1741 = vmatprep.subr.mxu0 0.0
        %1742 = vmatpush1.xpose.msra.mxu0 0.0
        %1743 = vmatprep.subr.mxu0 0.0
        %1744 = vmatpush1.xpose.msra.mxu0 0.0
        %1745 = vmatprep.mubr.f32.mxu0 0.0
        %1746 = vmatmul.mubr.f32.gmra.mrb[0].mxu0 %v1677
        %v1747 = vpop.f32.mrb[0].mxu0
        %v1748 = vadd.f32 0.0, %v1747
        %v1749 = vpop.f32.mrb[0].mxu0
        %1750 = vdwg.mxu0
        %v1751 = vsel %vm756, %v1748, -inf
        %1752 = vmax.xlane.f32.xlu0 %v1751
        %v1753 = vpop.xlane.xlu0 %1752
        %v1754 = vsub.f32 %v1748, %v1753
        %v1755 = vmul.f32 %v1754, 1.442695
        %v1756 = vpow.pop %v1755
        %v1757 = vsel %vm756, %v1756, 0.0
        %1758 = vadd.xlane.f32.xlu0 %v1757
        %v1759 = vpop.xlane.xlu0 %1758
        %v1760 = vrcp.pop %v1759
        %v1761 = vmul.f32 %v1756, %v1760
        %v1762 = vadd.f32 %v1596, %v1761
        %1763 = vrot.lane.b32.xlu0 %v675, 32
        %v1764 = vpop.permute.xlu0 %1763
        %v1767 = vsel %vm756, %v1761, 0
        %1769 = vmatprep.subr.mxu0 0.0
        %1770 = vmatpush1.msra.mxu0 %v1764
        %1771 = vmatprep.subr.mxu0 0.0
        %1772 = vmatpush1.msra.mxu0 0.0
        %1773 = vmatprep.subr.mxu0 0.0
        %1774 = vmatpush1.msra.mxu0 0.0
        %1775 = vmatprep.subr.mxu0 0.0
        %1776 = vmatpush1.msra.mxu0 0.0
        %1777 = vmatprep.subr.mxu0 0.0
        %1778 = vmatpush1.msra.mxu0 0.0
        %1779 = vmatprep.subr.mxu0 0.0
        %1780 = vmatpush1.msra.mxu0 0.0
        %1781 = vmatprep.subr.mxu0 0.0
        %1782 = vmatpush1.msra.mxu0 0.0
        %1783 = vmatprep.subr.mxu0 0.0
        %1784 = vmatpush1.msra.mxu0 0.0
        %1785 = vmatprep.subr.mxu0 0.0
        %1786 = vmatpush1.msra.mxu0 0.0
        %1787 = vmatprep.subr.mxu0 0.0
        %1788 = vmatpush1.msra.mxu0 0.0
        %1789 = vmatprep.subr.mxu0 0.0
        %1790 = vmatpush1.msra.mxu0 0.0
        %1791 = vmatprep.subr.mxu0 0.0
        %1792 = vmatpush1.msra.mxu0 0.0
        %1793 = vmatprep.subr.mxu0 0.0
        %1794 = vmatpush1.msra.mxu0 0.0
        %1795 = vmatprep.subr.mxu0 0.0
        %1796 = vmatpush1.msra.mxu0 0.0
        %1797 = vmatprep.subr.mxu0 0.0
        %1798 = vmatpush1.msra.mxu0 0.0
        %1799 = vmatprep.subr.mxu0 0.0
        %1800 = vmatpush1.msra.mxu0 0.0
        %1801 = vmatprep.subr.mxu0 0.0
        %1802 = vmatpush1.msra.mxu0 0.0
        %1803 = vmatprep.subr.mxu0 0.0
        %1804 = vmatpush1.msra.mxu0 0.0
        %1805 = vmatprep.subr.mxu0 0.0
        %1806 = vmatpush1.msra.mxu0 0.0
        %1807 = vmatprep.subr.mxu0 0.0
        %1808 = vmatpush1.msra.mxu0 0.0
        %1809 = vmatprep.subr.mxu0 0.0
        %1810 = vmatpush1.msra.mxu0 0.0
        %1811 = vmatprep.subr.mxu0 0.0
        %1812 = vmatpush1.msra.mxu0 0.0
        %1813 = vmatprep.subr.mxu0 0.0
        %1814 = vmatpush1.msra.mxu0 0.0
        %1815 = vmatprep.subr.mxu0 0.0
        %1816 = vmatpush1.msra.mxu0 0.0
        %1817 = vmatprep.subr.mxu0 0.0
        %1818 = vmatpush1.msra.mxu0 0.0
        %1819 = vmatprep.subr.mxu0 0.0
        %1820 = vmatpush1.msra.mxu0 0.0
        %1821 = vmatprep.subr.mxu0 0.0
        %1822 = vmatpush1.msra.mxu0 0.0
        %1823 = vmatprep.subr.mxu0 0.0
        %1824 = vmatpush1.msra.mxu0 0.0
        %1825 = vmatprep.subr.mxu0 0.0
        %1826 = vmatpush1.msra.mxu0 0.0
        %1827 = vmatprep.subr.mxu0 0.0
        %1828 = vmatpush1.msra.mxu0 0.0
        %1829 = vmatprep.subr.mxu0 0.0
        %1830 = vmatpush1.msra.mxu0 0.0
        %1831 = vmatprep.subr.mxu0 0.0
        %1832 = vmatpush1.msra.mxu0 0.0
        %1833 = vmatprep.mubr.f32.mxu0 0.0
        %1834 = vmatmul.mubr.f32.gmra.mrb[0].mxu0 %v1767
        %v1835 = vpop.f32.mrb[0].mxu0
        %v1836 = vadd.f32 0.0, %v1835
        %v1837 = vpop.f32.mrb[0].mxu0
        %1838 = vdwg.mxu0
        %1839 = vrot.lane.b32.xlu0 %v678, 16
        %v1840 = vpop.permute.xlu0 %1839
        %1841 = vrot.lane.b32.xlu0 %v606, 16
        %v1842 = vpop.permute.xlu0 %1841
        %v1843 = vsel %vm679, %v1840, 0
        %v1845 = vsel %vm679, %v1842, 0
        %1847 = vmatprep.subr.mxu0 0.0
        %1848 = vmatpush1.xpose.msra.mxu0 %v1845
        %1849 = vmatprep.subr.mxu0 0.0
        %1850 = vmatpush1.xpose.msra.mxu0 0.0
        %1851 = vmatprep.subr.mxu0 0.0
        %1852 = vmatpush1.xpose.msra.mxu0 0.0
        %1853 = vmatprep.subr.mxu0 0.0
        %1854 = vmatpush1.xpose.msra.mxu0 0.0
        %1855 = vmatprep.subr.mxu0 0.0
        %1856 = vmatpush1.xpose.msra.mxu0 0.0
        %1857 = vmatprep.subr.mxu0 0.0
        %1858 = vmatpush1.xpose.msra.mxu0 0.0
        %1859 = vmatprep.subr.mxu0 0.0
        %1860 = vmatpush1.xpose.msra.mxu0 0.0
        %1861 = vmatprep.subr.mxu0 0.0
        %1862 = vmatpush1.xpose.msra.mxu0 0.0
        %1863 = vmatprep.subr.mxu0 0.0
        %1864 = vmatpush1.xpose.msra.mxu0 0.0
        %1865 = vmatprep.subr.mxu0 0.0
        %1866 = vmatpush1.xpose.msra.mxu0 0.0
        %1867 = vmatprep.subr.mxu0 0.0
        %1868 = vmatpush1.xpose.msra.mxu0 0.0
        %1869 = vmatprep.subr.mxu0 0.0
        %1870 = vmatpush1.xpose.msra.mxu0 0.0
        %1871 = vmatprep.subr.mxu0 0.0
        %1872 = vmatpush1.xpose.msra.mxu0 0.0
        %1873 = vmatprep.subr.mxu0 0.0
        %1874 = vmatpush1.xpose.msra.mxu0 0.0
        %1875 = vmatprep.subr.mxu0 0.0
        %1876 = vmatpush1.xpose.msra.mxu0 0.0
        %1877 = vmatprep.subr.mxu0 0.0
        %1878 = vmatpush1.xpose.msra.mxu0 0.0
        %1879 = vmatprep.subr.mxu0 0.0
        %1880 = vmatpush1.xpose.msra.mxu0 0.0
        %1881 = vmatprep.subr.mxu0 0.0
        %1882 = vmatpush1.xpose.msra.mxu0 0.0
        %1883 = vmatprep.subr.mxu0 0.0
        %1884 = vmatpush1.xpose.msra.mxu0 0.0
        %1885 = vmatprep.subr.mxu0 0.0
        %1886 = vmatpush1.xpose.msra.mxu0 0.0
        %1887 = vmatprep.subr.mxu0 0.0
        %1888 = vmatpush1.xpose.msra.mxu0 0.0
        %1889 = vmatprep.subr.mxu0 0.0
        %1890 = vmatpush1.xpose.msra.mxu0 0.0
        %1891 = vmatprep.subr.mxu0 0.0
        %1892 = vmatpush1.xpose.msra.mxu0 0.0
        %1893 = vmatprep.subr.mxu0 0.0
        %1894 = vmatpush1.xpose.msra.mxu0 0.0
        %1895 = vmatprep.subr.mxu0 0.0
        %1896 = vmatpush1.xpose.msra.mxu0 0.0
        %1897 = vmatprep.subr.mxu0 0.0
        %1898 = vmatpush1.xpose.msra.mxu0 0.0
        %1899 = vmatprep.subr.mxu0 0.0
        %1900 = vmatpush1.xpose.msra.mxu0 0.0
        %1901 = vmatprep.subr.mxu0 0.0
        %1902 = vmatpush1.xpose.msra.mxu0 0.0
        %1903 = vmatprep.subr.mxu0 0.0
        %1904 = vmatpush1.xpose.msra.mxu0 0.0
        %1905 = vmatprep.subr.mxu0 0.0
        %1906 = vmatpush1.xpose.msra.mxu0 0.0
        %1907 = vmatprep.subr.mxu0 0.0
        %1908 = vmatpush1.xpose.msra.mxu0 0.0
        %1909 = vmatprep.subr.mxu0 0.0
        %1910 = vmatpush1.xpose.msra.mxu0 0.0
        %1911 = vmatprep.mubr.f32.mxu0 0.0
        %1912 = vmatmul.mubr.f32.gmra.mrb[0].mxu0 %v1843
        %v1913 = vpop.f32.mrb[0].mxu0
        %v1914 = vadd.f32 0.0, %v1913
        %v1915 = vpop.f32.mrb[0].mxu0
        %1916 = vdwg.mxu0
        %v1917 = vsel %vm756, %v1914, -inf
        %1918 = vmax.xlane.f32.xlu0 %v1917
        %v1919 = vpop.xlane.xlu0 %1918
        %v1920 = vsub.f32 %v1914, %v1919
        %v1921 = vmul.f32 %v1920, 1.442695
        %v1922 = vpow.pop %v1921
        %v1923 = vsel %vm756, %v1922, 0.0
        %1924 = vadd.xlane.f32.xlu0 %v1923
        %v1925 = vpop.xlane.xlu0 %1924
        %v1926 = vrcp.pop %v1925
        %v1927 = vmul.f32 %v1922, %v1926
        %v1928 = vadd.f32 %v1762, %v1927
        %1929 = vrot.lane.b32.xlu0 %v675, 16
        %v1930 = vpop.permute.xlu0 %1929
        %v1933 = vsel %vm756, %v1927, 0
        %1935 = vmatprep.subr.mxu0 0.0
        %1936 = vmatpush1.msra.mxu0 %v1930
        %1937 = vmatprep.subr.mxu0 0.0
        %1938 = vmatpush1.msra.mxu0 0.0
        %1939 = vmatprep.subr.mxu0 0.0
        %1940 = vmatpush1.msra.mxu0 0.0
        %1941 = vmatprep.subr.mxu0 0.0
        %1942 = vmatpush1.msra.mxu0 0.0
        %1943 = vmatprep.subr.mxu0 0.0
        %1944 = vmatpush1.msra.mxu0 0.0
        %1945 = vmatprep.subr.mxu0 0.0
        %1946 = vmatpush1.msra.mxu0 0.0
        %1947 = vmatprep.subr.mxu0 0.0
        %1948 = vmatpush1.msra.mxu0 0.0
        %1949 = vmatprep.subr.mxu0 0.0
        %1950 = vmatpush1.msra.mxu0 0.0
        %1951 = vmatprep.subr.mxu0 0.0
        %1952 = vmatpush1.msra.mxu0 0.0
        %1953 = vmatprep.subr.mxu0 0.0
        %1954 = vmatpush1.msra.mxu0 0.0
        %1955 = vmatprep.subr.mxu0 0.0
        %1956 = vmatpush1.msra.mxu0 0.0
        %1957 = vmatprep.subr.mxu0 0.0
        %1958 = vmatpush1.msra.mxu0 0.0
        %1959 = vmatprep.subr.mxu0 0.0
        %1960 = vmatpush1.msra.mxu0 0.0
        %1961 = vmatprep.subr.mxu0 0.0
        %1962 = vmatpush1.msra.mxu0 0.0
        %1963 = vmatprep.subr.mxu0 0.0
        %1964 = vmatpush1.msra.mxu0 0.0
        %1965 = vmatprep.subr.mxu0 0.0
        %1966 = vmatpush1.msra.mxu0 0.0
        %1967 = vmatprep.subr.mxu0 0.0
        %1968 = vmatpush1.msra.mxu0 0.0
        %1969 = vmatprep.subr.mxu0 0.0
        %1970 = vmatpush1.msra.mxu0 0.0
        %1971 = vmatprep.subr.mxu0 0.0
        %1972 = vmatpush1.msra.mxu0 0.0
        %1973 = vmatprep.subr.mxu0 0.0
        %1974 = vmatpush1.msra.mxu0 0.0
        %1975 = vmatprep.subr.mxu0 0.0
        %1976 = vmatpush1.msra.mxu0 0.0
        %1977 = vmatprep.subr.mxu0 0.0
        %1978 = vmatpush1.msra.mxu0 0.0
        %1979 = vmatprep.subr.mxu0 0.0
        %1980 = vmatpush1.msra.mxu0 0.0
        %1981 = vmatprep.subr.mxu0 0.0
        %1982 = vmatpush1.msra.mxu0 0.0
        %1983 = vmatprep.subr.mxu0 0.0
        %1984 = vmatpush1.msra.mxu0 0.0
        %1985 = vmatprep.subr.mxu0 0.0
        %1986 = vmatpush1.msra.mxu0 0.0
        %1987 = vmatprep.subr.mxu0 0.0
        %1988 = vmatpush1.msra.mxu0 0.0
        %1989 = vmatprep.subr.mxu0 0.0
        %1990 = vmatpush1.msra.mxu0 0.0
        %1991 = vmatprep.subr.mxu0 0.0
        %1992 = vmatpush1.msra.mxu0 0.0
        %1993 = vmatprep.subr.mxu0 0.0
        %1994 = vmatpush1.msra.mxu0 0.0
        %1995 = vmatprep.subr.mxu0 0.0
        %1996 = vmatpush1.msra.mxu0 0.0
        %1997 = vmatprep.subr.mxu0 0.0
        %1998 = vmatpush1.msra.mxu0 0.0
        %1999 = vmatprep.mubr.f32.mxu0 0.0
        %2000 = vmatmul.mubr.f32.gmra.mrb[0].mxu0 %v1933
        %v2001 = vpop.f32.mrb[0].mxu0
        %v2002 = vadd.f32 0.0, %v2001
        %v2003 = vpop.f32.mrb[0].mxu0
        %2004 = vdwg.mxu0
        %2006 = vrot.lane.b32.xlu0 %v1006, 16
        %v2007 = vpop.permute.xlu0 %2006
        %2010 = vrot.lane.b32.xlu0 %v1172, 32
        %v2011 = vpop.permute.xlu0 %2010
        %2014 = vrot.lane.b32.xlu0 %v1338, 48
        %v2015 = vpop.permute.xlu0 %2014
        %2018 = vrot.lane.b32.xlu0 %v1504, 64
        %v2019 = vpop.permute.xlu0 %2018
        %2022 = vrot.lane.b32.xlu0 %v1670, 80
        %v2023 = vpop.permute.xlu0 %2022
        %2026 = vrot.lane.b32.xlu0 %v1836, 96
        %v2027 = vpop.permute.xlu0 %2026
        %2030 = vrot.lane.b32.xlu0 %v2002, 112
        %v2031 = vpop.permute.xlu0 %2030
        %v2033 = vsel %vm679, %v839, %v2007
        %vm2034 = vcmask 261120
        %v2035 = vsel %vm2034, %v2033, %v2011
        %vm2036 = vcmask 392192
        %v2037 = vsel %vm2036, %v2035, %v2015
        %vm2038 = vcmask 523264
        %v2039 = vsel %vm2038, %v2037, %v2019
        %vm2040 = vcmask 654336
        %v2041 = vsel %vm2040, %v2039, %v2023
        %vm2042 = vcmask 785408
        %v2043 = vsel %vm2042, %v2041, %v2027
        %vm2044 = vcmask 916480
        %v2045 = vsel %vm2044, %v2043, %v2031
        %v2046 = vmul.f32 %v1928, 0.125
        %2047 = vst.msk [vmem:[%s470] sm:$0xff] %vm756, %v2046
        %v2048 = vld [vmem:[#allocation7] sm:$0xff]
        %v2049 = vld [vmem:[#allocation7 + $0x8] sm:$0xff]
        %v2050 = vld [vmem:[#allocation7 + $0x10] sm:$0xff]
        %v2051 = vld [vmem:[#allocation7 + $0x18] sm:$0xff]
        %v2052 = vld [vmem:[#allocation7 + $0x20] sm:$0xff]
        %v2053 = vld [vmem:[#allocation7 + $0x28] sm:$0xff]
        %v2054 = vld [vmem:[#allocation7 + $0x30] sm:$0xff]
        %v2055 = vld [vmem:[#allocation7 + $0x38] sm:$0xff]
        %v2056 = vld [vmem:[#allocation7 + $0x40] sm:$0xff]
        %v2057 = vld [vmem:[#allocation7 + $0x48] sm:$0xff]
        %v2058 = vld [vmem:[#allocation7 + $0x50] sm:$0xff]
        %v2059 = vld [vmem:[#allocation7 + $0x58] sm:$0xff]
        %v2060 = vld [vmem:[#allocation7 + $0x60] sm:$0xff]
        %v2061 = vld [vmem:[#allocation7 + $0x68] sm:$0xff]
        %v2062 = vld [vmem:[#allocation7 + $0x70] sm:$0xff]
        %v2063 = vld [vmem:[#allocation7 + $0x78] sm:$0xff]
        %v2064 = vld [vmem:[%s4] sm:$0x1]
        %v2066 = vlaneseq
        %v2067 = vshrl.u32 %v2066, 7
        %v2068 = vsub.s32 0, %v2067
        %v2069 = vrot.slane %v2064, %v2068
        %2071 = vmatprep.subr.mxu0 0.0
        %2072 = vmatpush1.msra.mxu0 %v2048
        %2073 = vmatprep.subr.mxu0 0.0
        %2074 = vmatpush1.msra.mxu0 %v2049
        %2075 = vmatprep.subr.mxu0 0.0
        %2076 = vmatpush1.msra.mxu0 %v2050
        %2077 = vmatprep.subr.mxu0 0.0
        %2078 = vmatpush1.msra.mxu0 %v2051
        %2079 = vmatprep.subr.mxu0 0.0
        %2080 = vmatpush1.msra.mxu0 %v2052
        %2081 = vmatprep.subr.mxu0 0.0
        %2082 = vmatpush1.msra.mxu0 %v2053
        %2083 = vmatprep.subr.mxu0 0.0
        %2084 = vmatpush1.msra.mxu0 %v2054
        %2085 = vmatprep.subr.mxu0 0.0
        %2086 = vmatpush1.msra.mxu0 %v2055
        %2087 = vmatprep.subr.mxu0 0.0
        %2088 = vmatpush1.msra.mxu0 %v2056
        %2089 = vmatprep.subr.mxu0 0.0
        %2090 = vmatpush1.msra.mxu0 %v2057
        %2091 = vmatprep.subr.mxu0 0.0
        %2092 = vmatpush1.msra.mxu0 %v2058
        %2093 = vmatprep.subr.mxu0 0.0
        %2094 = vmatpush1.msra.mxu0 %v2059
        %2095 = vmatprep.subr.mxu0 0.0
        %2096 = vmatpush1.msra.mxu0 %v2060
        %2097 = vmatprep.subr.mxu0 0.0
        %2098 = vmatpush1.msra.mxu0 %v2061
        %2099 = vmatprep.subr.mxu0 0.0
        %2100 = vmatpush1.msra.mxu0 %v2062
        %2101 = vmatprep.subr.mxu0 0.0
        %2102 = vmatpush1.msra.mxu0 %v2063
        %2103 = vmatprep.subr.mxu0 0.0
        %2104 = vmatpush1.msra.mxu0 0.0
        %2105 = vmatprep.subr.mxu0 0.0
        %2106 = vmatpush1.msra.mxu0 0.0
        %2107 = vmatprep.subr.mxu0 0.0
        %2108 = vmatpush1.msra.mxu0 0.0
        %2109 = vmatprep.subr.mxu0 0.0
        %2110 = vmatpush1.msra.mxu0 0.0
        %2111 = vmatprep.subr.mxu0 0.0
        %2112 = vmatpush1.msra.mxu0 0.0
        %2113 = vmatprep.subr.mxu0 0.0
        %2114 = vmatpush1.msra.mxu0 0.0
        %2115 = vmatprep.subr.mxu0 0.0
        %2116 = vmatpush1.msra.mxu0 0.0
        %2117 = vmatprep.subr.mxu0 0.0
        %2118 = vmatpush1.msra.mxu0 0.0
        %2119 = vmatprep.subr.mxu0 0.0
        %2120 = vmatpush1.msra.mxu0 0.0
        %2121 = vmatprep.subr.mxu0 0.0
        %2122 = vmatpush1.msra.mxu0 0.0
        %2123 = vmatprep.subr.mxu0 0.0
        %2124 = vmatpush1.msra.mxu0 0.0
        %2125 = vmatprep.subr.mxu0 0.0
        %2126 = vmatpush1.msra.mxu0 0.0
        %2127 = vmatprep.subr.mxu0 0.0
        %2128 = vmatpush1.msra.mxu0 0.0
        %2129 = vmatprep.subr.mxu0 0.0
        %2130 = vmatpush1.msra.mxu0 0.0
        %2131 = vmatprep.subr.mxu0 0.0
        %2132 = vmatpush1.msra.mxu0 0.0
        %2133 = vmatprep.subr.mxu0 0.0
        %2134 = vmatpush1.msra.mxu0 0.0
        %2135 = vmatprep.mubr.f32.mxu0 0.0
        %2136 = vmatmul.mubr.f32.gmra.mrb[0].mxu0 %v2045
        %v2137 = vpop.f32.mrb[0].mxu0
        %v2138 = vadd.f32 %v2069, %v2137
        %v2139 = vpop.f32.mrb[0].mxu0
        %2140 = vdwg.mxu0
        %v2141 = vld [vmem:[%s9] sm:$0xf]
        %v2142 = vadd.f32 %v471, %v2138
        %2143 = vadd.xlane.f32.xlu0 %v2142
        %v2144 = vpop.xlane.xlu0 %2143
        %v2145 = vrcp.pop 128.0
        %v2146 = vmul.f32 %v2144, %v2145
        %v2147 = vsub.f32 %v2142, %v2146
        %v2148 = vmul.f32 %v2147, %v2147
        %2149 = vadd.xlane.f32.xlu0 %v2148
        %v2150 = vpop.xlane.xlu0 %2149
        %v2151 = vmul.f32 %v2150, %v2145
        %v2152 = vadd.f32 %v2151, 1e-05
        %v2153 = vrsqrt.pop %v2152
        %v2154 = vmul.f32 %v2147, %v2153
        %v2155 = vlaneseq
        %v2156 = vshrl.u32 %v2155, 7
        %v2157 = vsub.s32 0, %v2156
        %v2158 = vrot.slane %v2141, %v2157
        %v2159 = vmul.f32 %v2154, %v2158
        %v2160 = vlaneseq
        %v2161 = vshrl.u32 %v2160, 7
        %v2162 = vsub.s32 1, %v2161
        %v2163 = vrot.slane %v2141, %v2162
        %v2164 = vadd.f32 %v2159, %v2163
        %v2165 = vld [vmem:[#allocation8] sm:$0xff]
        %v2166 = vld [vmem:[#allocation8 + $0x8] sm:$0xff]
        %v2167 = vld [vmem:[#allocation8 + $0x10] sm:$0xff]
        %v2168 = vld [vmem:[#allocation8 + $0x18] sm:$0xff]
        %v2169 = vld [vmem:[#allocation8 + $0x20] sm:$0xff]
        %v2170 = vld [vmem:[#allocation8 + $0x28] sm:$0xff]
        %v2171 = vld [vmem:[#allocation8 + $0x30] sm:$0xff]
        %v2172 = vld [vmem:[#allocation8 + $0x38] sm:$0xff]
        %v2173 = vld [vmem:[#allocation8 + $0x40] sm:$0xff]
        %v2174 = vld [vmem:[#allocation8 + $0x48] sm:$0xff]
        %v2175 = vld [vmem:[#allocation8 + $0x50] sm:$0xff]
        %v2176 = vld [vmem:[#allocation8 + $0x58] sm:$0xff]
        %v2177 = vld [vmem:[#allocation8 + $0x60] sm:$0xff]
        %v2178 = vld [vmem:[#allocation8 + $0x68] sm:$0xff]
        %v2179 = vld [vmem:[#allocation8 + $0x70] sm:$0xff]
        %v2180 = vld [vmem:[#allocation8 + $0x78] sm:$0xff]
        %v2181 = vld [vmem:[#allocation8 + $0x80] sm:$0xff]
        %v2182 = vld [vmem:[#allocation8 + $0x88] sm:$0xff]
        %v2183 = vld [vmem:[#allocation8 + $0x90] sm:$0xff]
        %v2184 = vld [vmem:[#allocation8 + $0x98] sm:$0xff]
        %v2185 = vld [vmem:[#allocation8 + $0xa0] sm:$0xff]
        %v2186 = vld [vmem:[#allocation8 + $0xa8] sm:$0xff]
        %v2187 = vld [vmem:[#allocation8 + $0xb0] sm:$0xff]
        %v2188 = vld [vmem:[#allocation8 + $0xb8] sm:$0xff]
        %v2189 = vld [vmem:[#allocation8 + $0xc0] sm:$0xff]
        %v2190 = vld [vmem:[#allocation8 + $0xc8] sm:$0xff]
        %v2191 = vld [vmem:[#allocation8 + $0xd0] sm:$0xff]
        %v2192 = vld [vmem:[#allocation8 + $0xd8] sm:$0xff]
        %v2193 = vld [vmem:[#allocation8 + $0xe0] sm:$0xff]
        %v2194 = vld [vmem:[#allocation8 + $0xe8] sm:$0xff]
        %v2195 = vld [vmem:[#allocation8 + $0xf0] sm:$0xff]
        %v2196 = vld [vmem:[#allocation8 + $0xf8] sm:$0xff]
        %v2197 = vld [vmem:[%s6] sm:$0x3]
        %v2199 = vlaneseq
        %v2200 = vshrl.u32 %v2199, 7
        %v2201 = vsub.s32 0, %v2200
        %v2202 = vrot.slane %v2197, %v2201
        %v2203 = vlaneseq
        %v2204 = vshrl.u32 %v2203, 7
        %v2205 = vsub.s32 1, %v2204
        %v2206 = vrot.slane %v2197, %v2205
        %2209 = vmatprep.subr.mxu0 %v2166
        %2210 = vmatpush1.msra.mxu0 %v2165
        %2211 = vmatprep.subr.mxu0 %v2168
        %2212 = vmatpush1.msra.mxu0 %v2167
        %2213 = vmatprep.subr.mxu0 %v2170
        %2214 = vmatpush1.msra.mxu0 %v2169
        %2215 = vmatprep.subr.mxu0 %v2172
        %2216 = vmatpush1.msra.mxu0 %v2171
        %2217 = vmatprep.subr.mxu0 %v2174
        %2218 = vmatpush1.msra.mxu0 %v2173
        %2219 = vmatprep.subr.mxu0 %v2176
        %2220 = vmatpush1.msra.mxu0 %v2175
        %2221 = vmatprep.subr.mxu0 %v2178
        %2222 = vmatpush1.msra.mxu0 %v2177
        %2223 = vmatprep.subr.mxu0 %v2180
        %2224 = vmatpush1.msra.mxu0 %v2179
        %2225 = vmatprep.subr.mxu0 %v2182
        %2226 = vmatpush1.msra.mxu0 %v2181
        %2227 = vmatprep.subr.mxu0 %v2184
        %2228 = vmatpush1.msra.mxu0 %v2183
        %2229 = vmatprep.subr.mxu0 %v2186
        %2230 = vmatpush1.msra.mxu0 %v2185
        %2231 = vmatprep.subr.mxu0 %v2188
        %2232 = vmatpush1.msra.mxu0 %v2187
        %2233 = vmatprep.subr.mxu0 %v2190
        %2234 = vmatpush1.msra.mxu0 %v2189
        %2235 = vmatprep.subr.mxu0 %v2192
        %2236 = vmatpush1.msra.mxu0 %v2191
        %2237 = vmatprep.subr.mxu0 %v2194
        %2238 = vmatpush1.msra.mxu0 %v2193
        %2239 = vmatprep.subr.mxu0 %v2196
        %2240 = vmatpush1.msra.mxu0 %v2195
        %2241 = vmatprep.subr.mxu0 0.0
        %2242 = vmatpush1.msra.mxu0 0.0
        %2243 = vmatprep.subr.mxu0 0.0
        %2244 = vmatpush1.msra.mxu0 0.0
        %2245 = vmatprep.subr.mxu0 0.0
        %2246 = vmatpush1.msra.mxu0 0.0
        %2247 = vmatprep.subr.mxu0 0.0
        %2248 = vmatpush1.msra.mxu0 0.0
        %2249 = vmatprep.subr.mxu0 0.0
        %2250 = vmatpush1.msra.mxu0 0.0
        %2251 = vmatprep.subr.mxu0 0.0
        %2252 = vmatpush1.msra.mxu0 0.0
        %2253 = vmatprep.subr.mxu0 0.0
        %2254 = vmatpush1.msra.mxu0 0.0
        %2255 = vmatprep.subr.mxu0 0.0
        %2256 = vmatpush1.msra.mxu0 0.0
        %2257 = vmatprep.subr.mxu0 0.0
        %2258 = vmatpush1.msra.mxu0 0.0
        %2259 = vmatprep.subr.mxu0 0.0
        %2260 = vmatpush1.msra.mxu0 0.0
        %2261 = vmatprep.subr.mxu0 0.0
        %2262 = vmatpush1.msra.mxu0 0.0
        %2263 = vmatprep.subr.mxu0 0.0
        %2264 = vmatpush1.msra.mxu0 0.0
        %2265 = vmatprep.subr.mxu0 0.0
        %2266 = vmatpush1.msra.mxu0 0.0
        %2267 = vmatprep.subr.mxu0 0.0
        %2268 = vmatpush1.msra.mxu0 0.0
        %2269 = vmatprep.subr.mxu0 0.0
        %2270 = vmatpush1.msra.mxu0 0.0
        %2271 = vmatprep.subr.mxu0 0.0
        %2272 = vmatpush1.msra.mxu0 0.0
        %2273 = vmatprep.mubr.f32.mxu0 0.0
        %2274 = vmatmul.mubr.f32.gmra.mrb[0].mxu0 %v2164
        %v2275 = vpop.f32.mrb[0].mxu0
        %v2276 = vadd.f32 %v2202, %v2275
        %v2277 = vpop.f32.mrb[0].mxu0
        %v2278 = vadd.f32 %v2206, %v2277
        %2279 = vdwg.mxu0
        %v2280 = vmul.f32 %v2276, 0.5
        %v2281 = vmul.f32 %v2278, 0.5
        %v2282 = vmul.f32 %v2276, 0.70710677
        %v2283 = vmul.f32 %v2278, 0.70710677
        %v2284 = verf.f32.pop %v2282
        %v2285 = verf.f32.pop %v2283
        %v2286 = vadd.f32 %v2284, 1.0
        %v2287 = vadd.f32 %v2285, 1.0
        %v2288 = vmul.f32 %v2280, %v2286
        %v2289 = vmul.f32 %v2281, %v2287
        %v2290 = vld [vmem:[#allocation10] sm:$0xff]
        %v2291 = vld [vmem:[#allocation10 + $0x8] sm:$0xff]
        %v2292 = vld [vmem:[#allocation10 + $0x10] sm:$0xff]
        %v2293 = vld [vmem:[#allocation10 + $0x18] sm:$0xff]
        %v2294 = vld [vmem:[#allocation10 + $0x20] sm:$0xff]
        %v2295 = vld [vmem:[#allocation10 + $0x28] sm:$0xff]
        %v2296 = vld [vmem:[#allocation10 + $0x30] sm:$0xff]
        %v2297 = vld [vmem:[#allocation10 + $0x38] sm:$0xff]
        %v2298 = vld [vmem:[#allocation10 + $0x40] sm:$0xff]
        %v2299 = vld [vmem:[#allocation10 + $0x48] sm:$0xff]
        %v2300 = vld [vmem:[#allocation10 + $0x50] sm:$0xff]
        %v2301 = vld [vmem:[#allocation10 + $0x58] sm:$0xff]
        %v2302 = vld [vmem:[#allocation10 + $0x60] sm:$0xff]
        %v2303 = vld [vmem:[#allocation10 + $0x68] sm:$0xff]
        %v2304 = vld [vmem:[#allocation10 + $0x70] sm:$0xff]
        %v2305 = vld [vmem:[#allocation10 + $0x78] sm:$0xff]
        %v2306 = vld [vmem:[#allocation10 + $0x80] sm:$0xff]
        %v2307 = vld [vmem:[#allocation10 + $0x88] sm:$0xff]
        %v2308 = vld [vmem:[#allocation10 + $0x90] sm:$0xff]
        %v2309 = vld [vmem:[#allocation10 + $0x98] sm:$0xff]
        %v2310 = vld [vmem:[#allocation10 + $0xa0] sm:$0xff]
        %v2311 = vld [vmem:[#allocation10 + $0xa8] sm:$0xff]
        %v2312 = vld [vmem:[#allocation10 + $0xb0] sm:$0xff]
        %v2313 = vld [vmem:[#allocation10 + $0xb8] sm:$0xff]
        %v2314 = vld [vmem:[#allocation10 + $0xc0] sm:$0xff]
        %v2315 = vld [vmem:[#allocation10 + $0xc8] sm:$0xff]
        %v2316 = vld [vmem:[#allocation10 + $0xd0] sm:$0xff]
        %v2317 = vld [vmem:[#allocation10 + $0xd8] sm:$0xff]
        %v2318 = vld [vmem:[#allocation10 + $0xe0] sm:$0xff]
        %v2319 = vld [vmem:[#allocation10 + $0xe8] sm:$0xff]
        %v2320 = vld [vmem:[#allocation10 + $0xf0] sm:$0xff]
        %v2321 = vld [vmem:[#allocation10 + $0xf8] sm:$0xff]
        %v2322 = vld [vmem:[%s8] sm:$0x1]
        %v2324 = vlaneseq
        %v2325 = vshrl.u32 %v2324, 7
        %v2326 = vsub.s32 0, %v2325
        %v2327 = vrot.slane %v2322, %v2326
        %2329 = vmatprep.subr.mxu0 0.0
        %2330 = vmatpush1.msra.mxu0 %v2290
        %2331 = vmatprep.subr.mxu0 0.0
        %2332 = vmatpush1.msra.mxu0 %v2291
        %2333 = vmatprep.subr.mxu0 0.0
        %2334 = vmatpush1.msra.mxu0 %v2292
        %2335 = vmatprep.subr.mxu0 0.0
        %2336 = vmatpush1.msra.mxu0 %v2293
        %2337 = vmatprep.subr.mxu0 0.0
        %2338 = vmatpush1.msra.mxu0 %v2294
        %2339 = vmatprep.subr.mxu0 0.0
        %2340 = vmatpush1.msra.mxu0 %v2295
        %2341 = vmatprep.subr.mxu0 0.0
        %2342 = vmatpush1.msra.mxu0 %v2296
        %2343 = vmatprep.subr.mxu0 0.0
        %2344 = vmatpush1.msra.mxu0 %v2297
        %2345 = vmatprep.subr.mxu0 0.0
        %2346 = vmatpush1.msra.mxu0 %v2298
        %2347 = vmatprep.subr.mxu0 0.0
        %2348 = vmatpush1.msra.mxu0 %v2299
        %2349 = vmatprep.subr.mxu0 0.0
        %2350 = vmatpush1.msra.mxu0 %v2300
        %2351 = vmatprep.subr.mxu0 0.0
        %2352 = vmatpush1.msra.mxu0 %v2301
        %2353 = vmatprep.subr.mxu0 0.0
        %2354 = vmatpush1.msra.mxu0 %v2302
        %2355 = vmatprep.subr.mxu0 0.0
        %2356 = vmatpush1.msra.mxu0 %v2303
        %2357 = vmatprep.subr.mxu0 0.0
        %2358 = vmatpush1.msra.mxu0 %v2304
        %2359 = vmatprep.subr.mxu0 0.0
        %2360 = vmatpush1.msra.mxu0 %v2305
        %2361 = vmatprep.subr.mxu0 0.0
        %2362 = vmatpush1.msra.mxu0 %v2306
        %2363 = vmatprep.subr.mxu0 0.0
        %2364 = vmatpush1.msra.mxu0 %v2307
        %2365 = vmatprep.subr.mxu0 0.0
        %2366 = vmatpush1.msra.mxu0 %v2308
        %2367 = vmatprep.subr.mxu0 0.0
        %2368 = vmatpush1.msra.mxu0 %v2309
        %2369 = vmatprep.subr.mxu0 0.0
        %2370 = vmatpush1.msra.mxu0 %v2310
        %2371 = vmatprep.subr.mxu0 0.0
        %2372 = vmatpush1.msra.mxu0 %v2311
        %2373 = vmatprep.subr.mxu0 0.0
        %2374 = vmatpush1.msra.mxu0 %v2312
        %2375 = vmatprep.subr.mxu0 0.0
        %2376 = vmatpush1.msra.mxu0 %v2313
        %2377 = vmatprep.subr.mxu0 0.0
        %2378 = vmatpush1.msra.mxu0 %v2314
        %2379 = vmatprep.subr.mxu0 0.0
        %2380 = vmatpush1.msra.mxu0 %v2315
        %2381 = vmatprep.subr.mxu0 0.0
        %2382 = vmatpush1.msra.mxu0 %v2316
        %2383 = vmatprep.subr.mxu0 0.0
        %2384 = vmatpush1.msra.mxu0 %v2317
        %2385 = vmatprep.subr.mxu0 0.0
        %2386 = vmatpush1.msra.mxu0 %v2318
        %2387 = vmatprep.subr.mxu0 0.0
        %2388 = vmatpush1.msra.mxu0 %v2319
        %2389 = vmatprep.subr.mxu0 0.0
        %2390 = vmatpush1.msra.mxu0 %v2320
        %2391 = vmatprep.subr.mxu0 0.0
        %2392 = vmatpush1.msra.mxu0 %v2321
        %2393 = vmatprep.mubr.f32.mxu0 %v2289
        %2394 = vmatmul.mubr.f32.gmra.mrb[0].mxu0 %v2288
        %v2395 = vpop.f32.mrb[0].mxu0
        %v2396 = vadd.f32 %v2327, %v2395
        %v2397 = vpop.f32.mrb[0].mxu0
        %2398 = vdwg.mxu0
        %v2399 = vadd.f32 %v2164, %v2396
        %2400 = vadd.xlane.f32.xlu0 %v2399
        %v2401 = vpop.xlane.xlu0 %2400
        %v2402 = vmul.f32 %v2401, %v2145
        %v2403 = vsub.f32 %v2399, %v2402
        %v2404 = vmul.f32 %v2403, %v2403
        %2405 = vadd.xlane.f32.xlu0 %v2404
        %v2406 = vpop.xlane.xlu0 %2405
        %v2407 = vmul.f32 %v2406, %v2145
        %v2408 = vadd.f32 %v2407, 1e-05
        %v2409 = vrsqrt.pop %v2408
        %v2410 = vmul.f32 %v2403, %v2409
        %v2411 = vlaneseq
        %v2412 = vshrl.u32 %v2411, 7
        %v2413 = vsub.s32 2, %v2412
        %v2414 = vrot.slane %v2141, %v2413
        %v2415 = vmul.f32 %v2410, %v2414
        %v2416 = vlaneseq
        %v2417 = vshrl.u32 %v2416, 7
        %v2418 = vsub.s32 3, %v2417
        %v2419 = vrot.slane %v2141, %v2418
        %v2420 = vadd.f32 %v2415, %v2419
        %2421 = vst [vmem:[%s463] sm:$0xff] %v2420
        %s2422 = sand.u32 %s257, 1
        %s2423 = scalar_lea.sflag [#allocation4], %s2422
        %s2424 = sand.u32 %s257, 1
        %s2425 = smul.addr %s2424, 8
        %s2426 = scalar_lea.vmem [#allocation11], %s2425
        %s2427 = sand.u32 %s283, 1
        %s2428 = scalar_lea.sflag [#allocation13], %s2427
        %s2429 = sand.u32 %s283, 1
        %s2430 = smul.addr %s2429, 8
        %s2431 = scalar_lea.vmem [#allocation12], %s2430
        // Predicated region
        $region81: #{tpu_custom_call.1} parent=59 // pred_check
          %p2432 = pneg %p267
        $region82: #{tpu_custom_call.1} parent=59 // pred_check_branch
          %2434 = sbr.rel (%p2432) target = $region84
        $region83: #{tpu_custom_call.1} parent=59 // pred_region
          %s2436 = ssub.s32 128, 128
          %2437 = vsyncadd %s2423, %s2436
          %s2438 = smul.addr %s34, 128
          %s2439 = scalar_lea.hbm %s10, %s2438
          %s2441 = sshll.u32 %s2426, 4
          %s2442 = int_to_ptr.vmem [resolvable:$true] %s2441
          %2444 = dma.vmem_to_hbm [thread:$0]  %s2442, 128, %s2439, %s2423
        $region84: #{tpu_custom_call.1} parent=59 // pred_fallthru
          _
        // Predicated region
        $region85: #{tpu_custom_call.1} parent=59 // pred_check
          %p2445 = pneg %p293
        $region86: #{tpu_custom_call.1} parent=59 // pred_check_branch
          %2447 = sbr.rel (%p2445) target = $region88
        $region87: #{tpu_custom_call.1} parent=59 // pred_region
          %s2449 = ssub.s32 128, 128
          %2450 = vsyncadd %s2428, %s2449
          %s2451 = smul.addr %s34, 128
          %s2452 = scalar_lea.hbm %s11, %s2451
          %s2454 = sshll.u32 %s2431, 4
          %s2455 = int_to_ptr.vmem [resolvable:$true] %s2454
          %2457 = dma.vmem_to_hbm [thread:$0]  %s2455, 128, %s2452, %s2428
        $region88: #{tpu_custom_call.1} parent=59 // pred_fallthru
          _
      $region60: #{tpu_custom_call.1} parent=5 // pred_fallthru
        _
      %p2458 = scmp.le.s32.totalorder 2, %s29
      // Predicated region
      $region89: #{tpu_custom_call.1} parent=5 // pred_check
        %p2459 = pneg %p2458
      $region90: #{tpu_custom_call.1} parent=5 // pred_check_branch
        %2461 = sbr.rel (%p2459) target = $region92
      $region91: #{tpu_custom_call.1} parent=5 // pred_region
        %s2462 = ssub.s32 %s29, 2
        // Predicated region
        $region93: #{tpu_custom_call.1} parent=91 // pred_check
          %p2463 = pneg %p273
        $region94: #{tpu_custom_call.1} parent=91 // pred_check_branch
          %2465 = sbr.rel (%p2463) target = $region96
        $region95: #{tpu_custom_call.1} parent=91 // pred_region
          %s2466 = sand.u32 %s258, 1
          %s2467 = scalar_lea.sflag [#allocation4], %s2466
          %s2468 = sand.u32 %s258, 1
          %s2469 = smul.addr %s2468, 8
          %s2470 = scalar_lea.vmem [#allocation11], %s2469
          %2471 = dma.done %s2467, 128
        $region96: #{tpu_custom_call.1} parent=91 // pred_fallthru
          _
        // Predicated region
        $region97: #{tpu_custom_call.1} parent=91 // pred_check
          %p2472 = pneg %p299
        $region98: #{tpu_custom_call.1} parent=91 // pred_check_branch
          %2474 = sbr.rel (%p2472) target = $region100
        $region99: #{tpu_custom_call.1} parent=91 // pred_region
          %s2475 = sand.u32 %s284, 1
          %s2476 = scalar_lea.sflag [#allocation13], %s2475
          %s2477 = sand.u32 %s284, 1
          %s2478 = smul.addr %s2477, 8
          %s2479 = scalar_lea.vmem [#allocation12], %s2478
          %2480 = dma.done %s2476, 128
        $region100: #{tpu_custom_call.1} parent=91 // pred_fallthru
          _
      $region92: #{tpu_custom_call.1} parent=5 // pred_fallthru
        _
    $region6: #{tpu_custom_call.1} parent=1 // loop_footer
      %s33 = sadd.s32 1, %s29
    $region7: #{tpu_custom_call.1} parent=1 // loop_footer_branch
      %28 = sbr.rel target = $region3
    $region8: #{tpu_custom_call.1} parent=1 // loop_exit
      _
    %2481 = vsyncpa [#allocation3], 1
    %s2482 = scalar_lea.sflag [#allocation3], 1
    %2483 = vsyncpa %s2482, 1
    %2484 = vsyncpa [#allocation6], 1
    %2485 = vsyncpa [#allocation9], 1
    %2486 = vsyncpa [#allocation4], 1
    %s2487 = scalar_lea.sflag [#allocation4], 1
    %2488 = vsyncpa %s2487, 1
    %2489 = vsyncpa [#allocation13], 1
    %s2490 = scalar_lea.sflag [#allocation13], 1
    %2491 = vsyncpa %s2490, 1

</llo_original>
